<compile_context>
chip_gen: v5e
topology: v5e:2x2
jax: 0.10.0
libtpu: 0.0.40
codegen_flags: <defaults>
</compile_context>

<pallas_src>
import functools

import jax
import jax.numpy as jnp
from jax import lax
from jax.experimental import pallas as pl
from jax.experimental.pallas import tpu as pltpu


def _round_up(x, m):
    return (x + m - 1) // m * m


def _choose_tile(h_out, target):
    th = min(h_out, max(1, target))
    while h_out % th:
        th -= 1
    return th


# ----------------------------------------------------------------------------
# Fused block kernel: expand 1x1 + BN1 + ReLU -> depthwise 3x3 + BN2 + ReLU
#                     -> project 1x1 + BN3 (+ shortcut) for one (batch, row-tile).
# ----------------------------------------------------------------------------
def _block_kernel(x_ref, w1_ref, s1_ref, b1_ref, wdw_ref, s2_ref, b2_ref,
                  w3_ref, s3_ref, b3_ref, *rest,
                  H, W, TH, W_out, stride, shortcut, mxu_dtype):
    if shortcut == "conv":
        wsc_ref, ssc_ref, bsc_ref, o_ref = rest
    else:
        (o_ref,) = rest

    Cin = x_ref.shape[3]       # padded input channels (multiple of 128)
    P = w1_ref.shape[1]        # padded expanded channels
    Cout = o_ref.shape[3]      # padded output channels
    Wp = x_ref.shape[2]        # W + 2 (spatially padded)
    RH = stride * (TH - 1) + 3  # input rows (padded coords) needed by this output tile

    t = pl.program_id(1)
    row_start = pl.multiple_of(t * (stride * TH), stride * TH)

    # ---- load the halo'd input row band once (x block stays VMEM-resident across t) ----
    xs = x_ref[:, pl.ds(row_start, RH), :, :].reshape(RH, Wp, Cin)

    # ---- expand 1x1 (MXU) + BN1 + ReLU ----
    h1 = jnp.dot(xs.reshape(RH * Wp, Cin).astype(mxu_dtype), w1_ref[...],
                 preferred_element_type=jnp.float32)
    h1 = jnp.maximum(h1 * s1_ref[...] + b1_ref[...], 0.0)
    h1 = h1.reshape(RH, Wp, P)

    # conv2 zero-pads its *input* (post BN1/ReLU); zero the halo ring explicitly.
    r = lax.broadcasted_iota(jnp.int32, (RH, Wp, P), 0) + row_start
    c = lax.broadcasted_iota(jnp.int32, (RH, Wp, P), 1)
    valid = (r >= 1) & (r <= H) & (c >= 1) & (c <= W)
    h1 = jnp.where(valid, h1, 0.0)

    # ---- depthwise 3x3 (stride applied here) + BN2 + ReLU (VPU, f32) ----
    wdw = wdw_ref[...]                                     # (9, P)
    acc = jnp.zeros((TH, W_out, P), jnp.float32)
    for kh in range(3):
        for kw in range(3):
            if stride == 1:
                win = h1[kh:kh + TH, kw:kw + W_out, :]
            else:
                # TODO(synk): strided value slices (untested path: the demo only runs
                # stride==1); may relayout in VMEM on some Mosaic versions.
                win = h1[kh:kh + stride * (TH - 1) + 1:stride,
                         kw:kw + stride * (W_out - 1) + 1:stride, :]
            tap = wdw[kh * 3 + kw:kh * 3 + kw + 1, :].reshape(1, 1, P)
            acc = acc + win * tap
    acc = jnp.maximum(acc * s2_ref[...].reshape(1, 1, P)
                      + b2_ref[...].reshape(1, 1, P), 0.0)

    # ---- project 1x1 (MXU) + BN3 ----
    y = jnp.dot(acc.reshape(TH * W_out, P).astype(mxu_dtype), w3_ref[...],
                preferred_element_type=jnp.float32)
    y = y * s3_ref[...] + b3_ref[...]

    # ---- shortcut (stride == 1 only) ----
    if shortcut == "conv":
        xin = xs[1:1 + TH, 1:1 + W, :].reshape(TH * W, Cin)
        sc = jnp.dot(xin.astype(mxu_dtype), wsc_ref[...],
                     preferred_element_type=jnp.float32)
        y = y + (sc * ssc_ref[...] + bsc_ref[...])
    elif shortcut == "identity":
        # in_planes == out_planes -> direct add, no eye-matrix matmul.
        y = y + xs[1:1 + TH, 1:1 + W, :].reshape(TH * W, Cin)

    o_ref[...] = y.reshape(1, TH, W_out, Cout).astype(o_ref.dtype)


# ----------------------------------------------------------------------------
# Wrapper: NCHW in / NCHW out, channel padding to 128, grid = (batch, row-tiles)
# ----------------------------------------------------------------------------
def block_forward(x_nchw, p, *, in_planes, out_planes, expansion, stride,
                  mxu_dtype=jnp.bfloat16, th_target=8):
    planes = expansion * in_planes
    N, _, H, W = x_nchw.shape
    x = jnp.transpose(x_nchw, (0, 2, 3, 1))  # -> NHWC

    Cin_p = _round_up(in_planes, 128)
    P_p = _round_up(planes, 128)
    Cout_p = _round_up(out_planes, 128)

    # Pad only the small Cin input: +1 spatial border (zeros) and channels -> 128-lane dense.
    xp = jnp.pad(x, ((0, 0), (1, 1), (1, 1), (0, Cin_p - in_planes)))
    Hp, Wp = H + 2, W + 2

    if stride == 1:
        H_out, W_out = H, W
    else:
        H_out = (H - 1) // stride + 1
        W_out = (W - 1) // stride + 1
    TH = _choose_tile(H_out, th_target)
    n_th = H_out // TH

    def padw(w, rows, cols):
        return jnp.pad(w, ((0, rows - w.shape[0]), (0, cols - w.shape[1])))

    def padv(v, cols):
        return jnp.pad(v.reshape(1, -1), ((0, 0), (0, cols - v.shape[0])))

    w1 = padw(p["w1"], Cin_p, P_p).astype(mxu_dtype)
    s1, b1 = padv(p["s1"], P_p), padv(p["b1"], P_p)
    wdw = padw(p["wdw"].reshape(9, planes), 9, P_p)          # f32 taps (VPU)
    s2, b2 = padv(p["s2"], P_p), padv(p["b2"], P_p)
    w3 = padw(p["w3"], P_p, Cout_p).astype(mxu_dtype)
    s3, b3 = padv(p["s3"], Cout_p), padv(p["b3"], Cout_p)

    if stride == 1:
        shortcut = "conv" if in_planes != out_planes else "identity"
    else:
        shortcut = "none"

    args = [xp, w1, s1, b1, wdw, s2, b2, w3, s3, b3]
    in_specs = [
        pl.BlockSpec((1, Hp, Wp, Cin_p), lambda n, t: (n, 0, 0, 0)),  # per-image, t-resident
        pl.BlockSpec((Cin_p, P_p), lambda n, t: (0, 0)),              # weights: VMEM-resident
        pl.BlockSpec((1, P_p), lambda n, t: (0, 0)),
        pl.BlockSpec((1, P_p), lambda n, t: (0, 0)),
        pl.BlockSpec((9, P_p), lambda n, t: (0, 0)),
        pl.BlockSpec((1, P_p), lambda n, t: (0, 0)),
        pl.BlockSpec((1, P_p), lambda n, t: (0, 0)),
        pl.BlockSpec((P_p, Cout_p), lambda n, t: (0, 0)),
        pl.BlockSpec((1, Cout_p), lambda n, t: (0, 0)),
        pl.BlockSpec((1, Cout_p), lambda n, t: (0, 0)),
    ]
    if shortcut == "conv":
        wsc = padw(p["wsc"], Cin_p, Cout_p).astype(mxu_dtype)
        ssc, bsc = padv(p["ssc"], Cout_p), padv(p["bsc"], Cout_p)
        args += [wsc, ssc, bsc]
        in_specs += [
            pl.BlockSpec((Cin_p, Cout_p), lambda n, t: (0, 0)),
            pl.BlockSpec((1, Cout_p), lambda n, t: (0, 0)),
            pl.BlockSpec((1, Cout_p), lambda n, t: (0, 0)),
        ]

    kernel = functools.partial(
        _block_kernel, H=H, W=W, TH=TH, W_out=W_out, stride=stride,
        shortcut=shortcut, mxu_dtype=mxu_dtype)

    out = pl.pallas_call(
        kernel,
        out_shape=jax.ShapeDtypeStruct((N, H_out, W_out, Cout_p), jnp.float32),
        grid=(N, n_th),
        in_specs=in_specs,
        out_specs=pl.BlockSpec((1, TH, W_out, Cout_p), lambda n, t: (n, t, 0, 0)),
        compiler_params=pltpu.CompilerParams(
            dimension_semantics=("parallel", "parallel"),
            vmem_limit_bytes=48 * 1024 * 1024),
    )(*args)

    out = out[:, :, :, :out_planes]           # drop padded channels
    return jnp.transpose(out, (0, 3, 1, 2))   # -> NCHW


# ----------------------------------------------------------------------------
# Parameter construction (folded eval-mode BN) + pure-JAX reference
# ----------------------------------------------------------------------------
def fold_bn(gamma, beta, mean, var, eps=1e-5):
    scale = gamma / jnp.sqrt(var + eps)
    bias = beta - mean * scale
    return scale, bias


def make_params(key, in_planes, out_planes, expansion, stride):
    planes = expansion * in_planes
    ks = jax.random.split(key, 20)

    def bn_params(k, ch):
        k1, k2, k3, k4 = jax.random.split(k, 4)
        gamma = 1.0 + 0.1 * jax.random.normal(k1, (ch,), jnp.float32)
        beta = 0.1 * jax.random.normal(k2, (ch,), jnp.float32)
        mean = 0.1 * jax.random.normal(k3, (ch,), jnp.float32)
        var = 1.0 + 0.5 * jax.random.uniform(k4, (ch,), jnp.float32)
        return fold_bn(gamma, beta, mean, var)

    p = {}
    p["w1"] = 0.2 * jax.random.normal(ks[0], (in_planes, planes), jnp.float32)
    p["s1"], p["b1"] = bn_params(ks[1], planes)
    p["wdw"] = 0.2 * jax.random.normal(ks[2], (3, 3, planes), jnp.float32)
    p["s2"], p["b2"] = bn_params(ks[3], planes)
    p["w3"] = 0.2 * jax.random.normal(ks[4], (planes, out_planes), jnp.float32)
    p["s3"], p["b3"] = bn_params(ks[5], out_planes)
    if stride == 1 and in_planes != out_planes:
        p["wsc"] = 0.2 * jax.random.normal(ks[6], (in_planes, out_planes), jnp.float32)
        p["ssc"], p["bsc"] = bn_params(ks[7], out_planes)
    return p


def block_ref(x_nchw, p, *, in_planes, out_planes, expansion, stride):
    planes = expansion * in_planes
    x = jnp.transpose(x_nchw, (0, 2, 3, 1))
    dn = ("NHWC", "HWIO", "NHWC")

    h = lax.conv_general_dilated(x, p["w1"].reshape(1, 1, in_planes, planes),
                                 (1, 1), [(0, 0), (0, 0)], dimension_numbers=dn)
    h = jnp.maximum(h * p["s1"] + p["b1"], 0.0)

    h = lax.conv_general_dilated(h, p["wdw"].reshape(3, 3, 1, planes),
                                 (stride, stride), [(1, 1), (1, 1)],
                                 dimension_numbers=dn, feature_group_count=planes)
    h = jnp.maximum(h * p["s2"] + p["b2"], 0.0)

    h = lax.conv_general_dilated(h, p["w3"].reshape(1, 1, planes, out_planes),
                                 (1, 1), [(0, 0), (0, 0)], dimension_numbers=dn)
    h = h * p["s3"] + p["b3"]

    if stride == 1:
        if in_planes != out_planes:
            sc = lax.conv_general_dilated(x, p["wsc"].reshape(1, 1, in_planes, out_planes),
                                          (1, 1), [(0, 0), (0, 0)], dimension_numbers=dn)
            sc = sc * p["ssc"] + p["bsc"]
        else:
            sc = x
        h = h + sc
    return jnp.transpose(h, (0, 3, 1, 2))


# ----------------------------------------------------------------------------
# Self-test
# ----------------------------------------------------------------------------
if __name__ == "__main__":
    def run_case(name, N, in_planes, out_planes, expansion, stride, H,
                 mxu_dtype, atol, rtol, key):
        kx, kp = jax.random.split(key)
        x = jax.random.normal(kx, (N, in_planes, H, H), jnp.float32)
        params = make_params(kp, in_planes, out_planes, expansion, stride)
        out = block_forward(x, params, in_planes=in_planes, out_planes=out_planes,
                            expansion=expansion, stride=stride, mxu_dtype=mxu_dtype)
        out = jax.block_until_ready(out)
        ref = block_ref(x, params, in_planes=in_planes, out_planes=out_planes,
                        expansion=expansion, stride=stride)
        ref = jax.block_until_ready(ref)
        assert out.shape == ref.shape, (name, out.shape, ref.shape)
        err = float(jnp.max(jnp.abs(out - ref)))
        assert jnp.allclose(out, ref, atol=atol, rtol=rtol), (name, err)

    key = jax.random.PRNGKey(0)
    k1, k2, k3 = jax.random.split(key, 3)

    # conv-shortcut path, f32 MXU (tight check)  -- x: (2, 4, 16, 16) NCHW
    run_case("conv_sc_f32", 2, 4, 8, 2, 1, 16, jnp.float32, 1e-4, 1e-4, k1)
    # identity-shortcut path (direct residual add), f32 MXU
    run_case("id_sc_f32", 2, 8, 8, 2, 1, 16, jnp.float32, 1e-4, 1e-4, k2)
    # conv-shortcut path with bf16 MXU matmuls (looser check)
    run_case("conv_sc_bf16", 2, 4, 8, 2, 1, 16, jnp.bfloat16, 5e-2, 5e-2, k3)

    print("KERNEL_OK")
</pallas_src>

<mosaic_0001>
module attributes {stable_mosaic.version = 11 : i64} {
  func.func @_block_kernel(%arg0: i32, %arg1: i32, %arg2: memref<1x18x18x128xf32, #tpu.memory_space<vmem>>, %arg3: memref<128x128xf32, #tpu.memory_space<vmem>>, %arg4: memref<1x128xf32, #tpu.memory_space<vmem>>, %arg5: memref<1x128xf32, #tpu.memory_space<vmem>>, %arg6: memref<9x128xf32, #tpu.memory_space<vmem>>, %arg7: memref<1x128xf32, #tpu.memory_space<vmem>>, %arg8: memref<1x128xf32, #tpu.memory_space<vmem>>, %arg9: memref<128x128xf32, #tpu.memory_space<vmem>>, %arg10: memref<1x128xf32, #tpu.memory_space<vmem>>, %arg11: memref<1x128xf32, #tpu.memory_space<vmem>>, %arg12: memref<128x128xf32, #tpu.memory_space<vmem>>, %arg13: memref<1x128xf32, #tpu.memory_space<vmem>>, %arg14: memref<1x128xf32, #tpu.memory_space<vmem>>, %arg15: memref<1x8x16x128xf32, #tpu.memory_space<vmem>>) attributes {dimension_semantics = [#tpu.dimension_semantics<parallel>, #tpu.dimension_semantics<parallel>], iteration_bounds = array<i64: 2, 2>, scalar_prefetch = 0 : i64, scratch_operands = 0 : i64, tpu.core_type = #tpu.core_type<tc>, window_params = [{transform_indices = @transform_0, window_bounds = array<i64: 1, 18, 18, 128>}, {pipeline_mode = #tpu.pipeline_mode<synchronous>, transform_indices = @transform_1, window_bounds = array<i64: 128, 128>}, {pipeline_mode = #tpu.pipeline_mode<synchronous>, transform_indices = @transform_2, window_bounds = array<i64: 1, 128>}, {pipeline_mode = #tpu.pipeline_mode<synchronous>, transform_indices = @transform_3, window_bounds = array<i64: 1, 128>}, {pipeline_mode = #tpu.pipeline_mode<synchronous>, transform_indices = @transform_4, window_bounds = array<i64: 9, 128>}, {pipeline_mode = #tpu.pipeline_mode<synchronous>, transform_indices = @transform_5, window_bounds = array<i64: 1, 128>}, {pipeline_mode = #tpu.pipeline_mode<synchronous>, transform_indices = @transform_6, window_bounds = array<i64: 1, 128>}, {pipeline_mode = #tpu.pipeline_mode<synchronous>, transform_indices = @transform_7, window_bounds = array<i64: 128, 128>}, {pipeline_mode = #tpu.pipeline_mode<synchronous>, transform_indices = @transform_8, window_bounds = array<i64: 1, 128>}, {pipeline_mode = #tpu.pipeline_mode<synchronous>, transform_indices = @transform_9, window_bounds = array<i64: 1, 128>}, {pipeline_mode = #tpu.pipeline_mode<synchronous>, transform_indices = @transform_10, window_bounds = array<i64: 128, 128>}, {pipeline_mode = #tpu.pipeline_mode<synchronous>, transform_indices = @transform_11, window_bounds = array<i64: 1, 128>}, {pipeline_mode = #tpu.pipeline_mode<synchronous>, transform_indices = @transform_12, window_bounds = array<i64: 1, 128>}, {transform_indices = @transform_13, window_bounds = array<i64: 1, 8, 16, 128>}]} {
    %c8_i32 = arith.constant 8 : i32
    %0 = arith.muli %arg1, %c8_i32 : i32
    %1 = tpu.assume_multiple %0, 8 : i32
    %c0 = arith.constant 0 : index
    %2 = arith.index_cast %1 : i32 to index
    %c0_0 = arith.constant 0 : index
    %c0_1 = arith.constant 0 : index
    %3 = vector.load %arg2[%c0, %2, %c0_0, %c0_1] : memref<1x18x18x128xf32, #tpu.memory_space<vmem>>, vector<1x10x18x128xf32>
    %4 = vector.shape_cast %3 : vector<1x10x18x128xf32> to vector<10x18x128xf32>
    %5 = vector.shape_cast %4 : vector<10x18x128xf32> to vector<180x128xf32>
    %c0_2 = arith.constant 0 : index
    %c0_3 = arith.constant 0 : index
    %6 = vector.load %arg3[%c0_2, %c0_3] : memref<128x128xf32, #tpu.memory_space<vmem>>, vector<128x128xf32>
    %cst = arith.constant dense<0.000000e+00> : vector<180x128xf32>
    %7 = tpu.matmul %5, %6, %cst {dimension_numbers = #tpu.dot_dimension_numbers<[1], [0], [0], [1], [0, 0, 1, 1], [], []>} : vector<180x128xf32>, vector<128x128xf32>, vector<180x128xf32> -> vector<180x128xf32>
    %c0_4 = arith.constant 0 : index
    %c0_5 = arith.constant 0 : index
    %8 = vector.load %arg4[%c0_4, %c0_5] : memref<1x128xf32, #tpu.memory_space<vmem>>, vector<1x128xf32>
    %9 = vector.broadcast %8 : vector<1x128xf32> to vector<180x128xf32>
    %10 = arith.mulf %7, %9 : vector<180x128xf32>
    %c0_6 = arith.constant 0 : index
    %c0_7 = arith.constant 0 : index
    %11 = vector.load %arg5[%c0_6, %c0_7] : memref<1x128xf32, #tpu.memory_space<vmem>>, vector<1x128xf32>
    %12 = vector.broadcast %11 : vector<1x128xf32> to vector<180x128xf32>
    %13 = arith.addf %10, %12 : vector<180x128xf32>
    %cst_8 = arith.constant 0.000000e+00 : f32
    %14 = vector.broadcast %cst_8 : f32 to vector<180x128xf32>
    %15 = arith.maximumf %13, %14 : vector<180x128xf32>
    %16 = vector.shape_cast %15 : vector<180x128xf32> to vector<10x18x128xf32>
    %17 = tpu.iota {dimensions = array<i32: 0>} : vector<10x18x128xi32>
    %18 = vector.broadcast %1 : i32 to vector<10x18x128xi32>
    %19 = arith.addi %17, %18 : vector<10x18x128xi32>
    %20 = tpu.iota {dimensions = array<i32: 1>} : vector<10x18x128xi32>
    %c1_i32 = arith.constant 1 : i32
    %21 = vector.broadcast %c1_i32 : i32 to vector<10x18x128xi32>
    %22 = arith.cmpi sge, %19, %21 : vector<10x18x128xi32>
    %c16_i32 = arith.constant 16 : i32
    %23 = vector.broadcast %c16_i32 : i32 to vector<10x18x128xi32>
    %24 = arith.cmpi sle, %19, %23 : vector<10x18x128xi32>
    %25 = arith.andi %22, %24 : vector<10x18x128xi1>
    %c1_i32_9 = arith.constant 1 : i32
    %26 = vector.broadcast %c1_i32_9 : i32 to vector<10x18x128xi32>
    %27 = arith.cmpi sge, %20, %26 : vector<10x18x128xi32>
    %28 = arith.andi %25, %27 : vector<10x18x128xi1>
    %c16_i32_10 = arith.constant 16 : i32
    %29 = vector.broadcast %c16_i32_10 : i32 to vector<10x18x128xi32>
    %30 = arith.cmpi sle, %20, %29 : vector<10x18x128xi32>
    %31 = arith.andi %28, %30 : vector<10x18x128xi1>
    %cst_11 = arith.constant 0.000000e+00 : f32
    %32 = vector.broadcast %cst_11 : f32 to vector<10x18x128xf32>
    %33 = arith.select %31, %16, %32 : vector<10x18x128xi1>, vector<10x18x128xf32>
    %c0_12 = arith.constant 0 : index
    %c0_13 = arith.constant 0 : index
    %34 = vector.load %arg6[%c0_12, %c0_13] : memref<9x128xf32, #tpu.memory_space<vmem>>, vector<9x128xf32>
    %cst_14 = arith.constant 0.000000e+00 : f32
    %35 = vector.broadcast %cst_14 : f32 to vector<8x16x128xf32>
    %36 = vector.extract_strided_slice %33 {offsets = [0, 0, 0], sizes = [8, 16, 128], strides = [1, 1, 1]} : vector<10x18x128xf32> to vector<8x16x128xf32>
    %37 = vector.extract_strided_slice %34 {offsets = [0, 0], sizes = [1, 128], strides = [1, 1]} : vector<9x128xf32> to vector<1x128xf32>
    %38 = vector.shape_cast %37 : vector<1x128xf32> to vector<1x1x128xf32>
    %39 = vector.broadcast %38 : vector<1x1x128xf32> to vector<8x16x128xf32>
    %40 = arith.mulf %36, %39 : vector<8x16x128xf32>
    %41 = arith.addf %35, %40 : vector<8x16x128xf32>
    %42 = vector.extract_strided_slice %33 {offsets = [0, 1, 0], sizes = [8, 16, 128], strides = [1, 1, 1]} : vector<10x18x128xf32> to vector<8x16x128xf32>
    %43 = vector.extract_strided_slice %34 {offsets = [1, 0], sizes = [1, 128], strides = [1, 1]} : vector<9x128xf32> to vector<1x128xf32>
    %44 = vector.shape_cast %43 : vector<1x128xf32> to vector<1x1x128xf32>
    %45 = vector.broadcast %44 : vector<1x1x128xf32> to vector<8x16x128xf32>
    %46 = arith.mulf %42, %45 : vector<8x16x128xf32>
    %47 = arith.addf %41, %46 : vector<8x16x128xf32>
    %48 = vector.extract_strided_slice %33 {offsets = [0, 2, 0], sizes = [8, 16, 128], strides = [1, 1, 1]} : vector<10x18x128xf32> to vector<8x16x128xf32>
    %49 = vector.extract_strided_slice %34 {offsets = [2, 0], sizes = [1, 128], strides = [1, 1]} : vector<9x128xf32> to vector<1x128xf32>
    %50 = vector.shape_cast %49 : vector<1x128xf32> to vector<1x1x128xf32>
    %51 = vector.broadcast %50 : vector<1x1x128xf32> to vector<8x16x128xf32>
    %52 = arith.mulf %48, %51 : vector<8x16x128xf32>
    %53 = arith.addf %47, %52 : vector<8x16x128xf32>
    %54 = vector.extract_strided_slice %33 {offsets = [1, 0, 0], sizes = [8, 16, 128], strides = [1, 1, 1]} : vector<10x18x128xf32> to vector<8x16x128xf32>
    %55 = vector.extract_strided_slice %34 {offsets = [3, 0], sizes = [1, 128], strides = [1, 1]} : vector<9x128xf32> to vector<1x128xf32>
    %56 = vector.shape_cast %55 : vector<1x128xf32> to vector<1x1x128xf32>
    %57 = vector.broadcast %56 : vector<1x1x128xf32> to vector<8x16x128xf32>
    %58 = arith.mulf %54, %57 : vector<8x16x128xf32>
    %59 = arith.addf %53, %58 : vector<8x16x128xf32>
    %60 = vector.extract_strided_slice %33 {offsets = [1, 1, 0], sizes = [8, 16, 128], strides = [1, 1, 1]} : vector<10x18x128xf32> to vector<8x16x128xf32>
    %61 = vector.extract_strided_slice %34 {offsets = [4, 0], sizes = [1, 128], strides = [1, 1]} : vector<9x128xf32> to vector<1x128xf32>
    %62 = vector.shape_cast %61 : vector<1x128xf32> to vector<1x1x128xf32>
    %63 = vector.broadcast %62 : vector<1x1x128xf32> to vector<8x16x128xf32>
    %64 = arith.mulf %60, %63 : vector<8x16x128xf32>
    %65 = arith.addf %59, %64 : vector<8x16x128xf32>
    %66 = vector.extract_strided_slice %33 {offsets = [1, 2, 0], sizes = [8, 16, 128], strides = [1, 1, 1]} : vector<10x18x128xf32> to vector<8x16x128xf32>
    %67 = vector.extract_strided_slice %34 {offsets = [5, 0], sizes = [1, 128], strides = [1, 1]} : vector<9x128xf32> to vector<1x128xf32>
    %68 = vector.shape_cast %67 : vector<1x128xf32> to vector<1x1x128xf32>
    %69 = vector.broadcast %68 : vector<1x1x128xf32> to vector<8x16x128xf32>
    %70 = arith.mulf %66, %69 : vector<8x16x128xf32>
    %71 = arith.addf %65, %70 : vector<8x16x128xf32>
    %72 = vector.extract_strided_slice %33 {offsets = [2, 0, 0], sizes = [8, 16, 128], strides = [1, 1, 1]} : vector<10x18x128xf32> to vector<8x16x128xf32>
    %73 = vector.extract_strided_slice %34 {offsets = [6, 0], sizes = [1, 128], strides = [1, 1]} : vector<9x128xf32> to vector<1x128xf32>
    %74 = vector.shape_cast %73 : vector<1x128xf32> to vector<1x1x128xf32>
    %75 = vector.broadcast %74 : vector<1x1x128xf32> to vector<8x16x128xf32>
    %76 = arith.mulf %72, %75 : vector<8x16x128xf32>
    %77 = arith.addf %71, %76 : vector<8x16x128xf32>
    %78 = vector.extract_strided_slice %33 {offsets = [2, 1, 0], sizes = [8, 16, 128], strides = [1, 1, 1]} : vector<10x18x128xf32> to vector<8x16x128xf32>
    %79 = vector.extract_strided_slice %34 {offsets = [7, 0], sizes = [1, 128], strides = [1, 1]} : vector<9x128xf32> to vector<1x128xf32>
    %80 = vector.shape_cast %79 : vector<1x128xf32> to vector<1x1x128xf32>
    %81 = vector.broadcast %80 : vector<1x1x128xf32> to vector<8x16x128xf32>
    %82 = arith.mulf %78, %81 : vector<8x16x128xf32>
    %83 = arith.addf %77, %82 : vector<8x16x128xf32>
    %84 = vector.extract_strided_slice %33 {offsets = [2, 2, 0], sizes = [8, 16, 128], strides = [1, 1, 1]} : vector<10x18x128xf32> to vector<8x16x128xf32>
    %85 = vector.extract_strided_slice %34 {offsets = [8, 0], sizes = [1, 128], strides = [1, 1]} : vector<9x128xf32> to vector<1x128xf32>
    %86 = vector.shape_cast %85 : vector<1x128xf32> to vector<1x1x128xf32>
    %87 = vector.broadcast %86 : vector<1x1x128xf32> to vector<8x16x128xf32>
    %88 = arith.mulf %84, %87 : vector<8x16x128xf32>
    %89 = arith.addf %83, %88 : vector<8x16x128xf32>
    %c0_15 = arith.constant 0 : index
    %c0_16 = arith.constant 0 : index
    %90 = vector.load %arg7[%c0_15, %c0_16] : memref<1x128xf32, #tpu.memory_space<vmem>>, vector<1x128xf32>
    %91 = vector.shape_cast %90 : vector<1x128xf32> to vector<1x1x128xf32>
    %92 = vector.broadcast %91 : vector<1x1x128xf32> to vector<8x16x128xf32>
    %93 = arith.mulf %89, %92 : vector<8x16x128xf32>
    %c0_17 = arith.constant 0 : index
    %c0_18 = arith.constant 0 : index
    %94 = vector.load %arg8[%c0_17, %c0_18] : memref<1x128xf32, #tpu.memory_space<vmem>>, vector<1x128xf32>
    %95 = vector.shape_cast %94 : vector<1x128xf32> to vector<1x1x128xf32>
    %96 = vector.broadcast %95 : vector<1x1x128xf32> to vector<8x16x128xf32>
    %97 = arith.addf %93, %96 : vector<8x16x128xf32>
    %cst_19 = arith.constant 0.000000e+00 : f32
    %98 = vector.broadcast %cst_19 : f32 to vector<8x16x128xf32>
    %99 = arith.maximumf %97, %98 : vector<8x16x128xf32>
    %100 = vector.shape_cast %99 : vector<8x16x128xf32> to vector<128x128xf32>
    %c0_20 = arith.constant 0 : index
    %c0_21 = arith.constant 0 : index
    %101 = vector.load %arg9[%c0_20, %c0_21] : memref<128x128xf32, #tpu.memory_space<vmem>>, vector<128x128xf32>
    %cst_22 = arith.constant dense<0.000000e+00> : vector<128x128xf32>
    %102 = tpu.matmul %100, %101, %cst_22 {dimension_numbers = #tpu.dot_dimension_numbers<[1], [0], [0], [1], [0, 0, 1, 1], [], []>} : vector<128x128xf32>, vector<128x128xf32>, vector<128x128xf32> -> vector<128x128xf32>
    %c0_23 = arith.constant 0 : index
    %c0_24 = arith.constant 0 : index
    %103 = vector.load %arg10[%c0_23, %c0_24] : memref<1x128xf32, #tpu.memory_space<vmem>>, vector<1x128xf32>
    %104 = vector.broadcast %103 : vector<1x128xf32> to vector<128x128xf32>
    %105 = arith.mulf %102, %104 : vector<128x128xf32>
    %c0_25 = arith.constant 0 : index
    %c0_26 = arith.constant 0 : index
    %106 = vector.load %arg11[%c0_25, %c0_26] : memref<1x128xf32, #tpu.memory_space<vmem>>, vector<1x128xf32>
    %107 = vector.broadcast %106 : vector<1x128xf32> to vector<128x128xf32>
    %108 = arith.addf %105, %107 : vector<128x128xf32>
    %109 = vector.extract_strided_slice %4 {offsets = [1, 1, 0], sizes = [8, 16, 128], strides = [1, 1, 1]} : vector<10x18x128xf32> to vector<8x16x128xf32>
    %110 = vector.shape_cast %109 : vector<8x16x128xf32> to vector<128x128xf32>
    %c0_27 = arith.constant 0 : index
    %c0_28 = arith.constant 0 : index
    %111 = vector.load %arg12[%c0_27, %c0_28] : memref<128x128xf32, #tpu.memory_space<vmem>>, vector<128x128xf32>
    %cst_29 = arith.constant dense<0.000000e+00> : vector<128x128xf32>
    %112 = tpu.matmul %110, %111, %cst_29 {dimension_numbers = #tpu.dot_dimension_numbers<[1], [0], [0], [1], [0, 0, 1, 1], [], []>} : vector<128x128xf32>, vector<128x128xf32>, vector<128x128xf32> -> vector<128x128xf32>
    %c0_30 = arith.constant 0 : index
    %c0_31 = arith.constant 0 : index
    %113 = vector.load %arg13[%c0_30, %c0_31] : memref<1x128xf32, #tpu.memory_space<vmem>>, vector<1x128xf32>
    %114 = vector.broadcast %113 : vector<1x128xf32> to vector<128x128xf32>
    %115 = arith.mulf %112, %114 : vector<128x128xf32>
    %c0_32 = arith.constant 0 : index
    %c0_33 = arith.constant 0 : index
    %116 = vector.load %arg14[%c0_32, %c0_33] : memref<1x128xf32, #tpu.memory_space<vmem>>, vector<1x128xf32>
    %117 = vector.broadcast %116 : vector<1x128xf32> to vector<128x128xf32>
    %118 = arith.addf %115, %117 : vector<128x128xf32>
    %119 = arith.addf %108, %118 : vector<128x128xf32>
    %120 = vector.shape_cast %119 : vector<128x128xf32> to vector<1x8x16x128xf32>
    %c0_34 = arith.constant 0 : index
    %c0_35 = arith.constant 0 : index
    %c0_36 = arith.constant 0 : index
    %c0_37 = arith.constant 0 : index
    %121 = vector.load %arg15[%c0_34, %c0_35, %c0_36, %c0_37] : memref<1x8x16x128xf32, #tpu.memory_space<vmem>>, vector<1x8x16x128xf32>
    tpu.vector_store %arg15[%c0_34, %c0_35, %c0_36, %c0_37], %120 {strides = array<i32>} : memref<1x8x16x128xf32, #tpu.memory_space<vmem>>, vector<1x8x16x128xf32>,
    return
  }
  func.func @transform_0(%arg0: i32, %arg1: i32) -> (i32, i32, i32, i32) {
    %c0_i32 = arith.constant 0 : i32
    %c0_i32_0 = arith.constant 0 : i32
    %c0_i32_1 = arith.constant 0 : i32
    %c0_i32_2 = arith.constant 0 : i32
    return %arg0, %c0_i32, %c0_i32_0, %c0_i32_1 : i32, i32, i32, i32
  }
  func.func @transform_1(%arg0: i32, %arg1: i32) -> (i32, i32) {
    %c0_i32 = arith.constant 0 : i32
    %c0_i32_0 = arith.constant 0 : i32
    %c0_i32_1 = arith.constant 0 : i32
    return %c0_i32, %c0_i32_0 : i32, i32
  }
  func.func @transform_2(%arg0: i32, %arg1: i32) -> (i32, i32) {
    %c0_i32 = arith.constant 0 : i32
    %c0_i32_0 = arith.constant 0 : i32
    %c0_i32_1 = arith.constant 0 : i32
    return %c0_i32, %c0_i32_0 : i32, i32
  }
  func.func @transform_3(%arg0: i32, %arg1: i32) -> (i32, i32) {
    %c0_i32 = arith.constant 0 : i32
    %c0_i32_0 = arith.constant 0 : i32
    %c0_i32_1 = arith.constant 0 : i32
    return %c0_i32, %c0_i32_0 : i32, i32
  }
  func.func @transform_4(%arg0: i32, %arg1: i32) -> (i32, i32) {
    %c0_i32 = arith.constant 0 : i32
    %c0_i32_0 = arith.constant 0 : i32
    %c0_i32_1 = arith.constant 0 : i32
    return %c0_i32, %c0_i32_0 : i32, i32
  }
  func.func @transform_5(%arg0: i32, %arg1: i32) -> (i32, i32) {
    %c0_i32 = arith.constant 0 : i32
    %c0_i32_0 = arith.constant 0 : i32
    %c0_i32_1 = arith.constant 0 : i32
    return %c0_i32, %c0_i32_0 : i32, i32
  }
  func.func @transform_6(%arg0: i32, %arg1: i32) -> (i32, i32) {
    %c0_i32 = arith.constant 0 : i32
    %c0_i32_0 = arith.constant 0 : i32
    %c0_i32_1 = arith.constant 0 : i32
    return %c0_i32, %c0_i32_0 : i32, i32
  }
  func.func @transform_7(%arg0: i32, %arg1: i32) -> (i32, i32) {
    %c0_i32 = arith.constant 0 : i32
    %c0_i32_0 = arith.constant 0 : i32
    %c0_i32_1 = arith.constant 0 : i32
    return %c0_i32, %c0_i32_0 : i32, i32
  }
  func.func @transform_8(%arg0: i32, %arg1: i32) -> (i32, i32) {
    %c0_i32 = arith.constant 0 : i32
    %c0_i32_0 = arith.constant 0 : i32
    %c0_i32_1 = arith.constant 0 : i32
    return %c0_i32, %c0_i32_0 : i32, i32
  }
  func.func @transform_9(%arg0: i32, %arg1: i32) -> (i32, i32) {
    %c0_i32 = arith.constant 0 : i32
    %c0_i32_0 = arith.constant 0 : i32
    %c0_i32_1 = arith.constant 0 : i32
    return %c0_i32, %c0_i32_0 : i32, i32
  }
  func.func @transform_10(%arg0: i32, %arg1: i32) -> (i32, i32) {
    %c0_i32 = arith.constant 0 : i32
    %c0_i32_0 = arith.constant 0 : i32
    %c0_i32_1 = arith.constant 0 : i32
    return %c0_i32, %c0_i32_0 : i32, i32
  }
  func.func @transform_11(%arg0: i32, %arg1: i32) -> (i32, i32) {
    %c0_i32 = arith.constant 0 : i32
    %c0_i32_0 = arith.constant 0 : i32
    %c0_i32_1 = arith.constant 0 : i32
    return %c0_i32, %c0_i32_0 : i32, i32
  }
  func.func @transform_12(%arg0: i32, %arg1: i32) -> (i32, i32) {
    %c0_i32 = arith.constant 0 : i32
    %c0_i32_0 = arith.constant 0 : i32
    %c0_i32_1 = arith.constant 0 : i32
    return %c0_i32, %c0_i32_0 : i32, i32
  }
  func.func @transform_13(%arg0: i32, %arg1: i32) -> (i32, i32, i32, i32) {
    %c0_i32 = arith.constant 0 : i32
    %c0_i32_0 = arith.constant 0 : i32
    %c0_i32_1 = arith.constant 0 : i32
    return %arg0, %arg1, %c0_i32, %c0_i32_0 : i32, i32, i32, i32
  }
}

</mosaic_0001>

<llo_original>
// kernel: tpu_custom_call.1
$region0: #{tpu_custom_call.1}
  #allocation0 [shape = 'u32[]', space=smem, size = 0x4, offset = 0x4, fixed_abs, tag = 'smem constant byte address 0x4 - core index']
  #allocation1 [shape = 'u32[72,128]{1,0:T(1,128)}', space=vmem, size = 0x9000, scoped, tag = 'internal scratch']
  %s0 = inlined_call_operand.vmem [shape: f32[2,18,18,128], index: 0, kind: input, shape index: {}]
  %s1 = inlined_call_operand.vmem [shape: f32[128,128], index: 1, kind: input, shape index: {}]
  %s2 = inlined_call_operand.vmem [shape: f32[1,128], index: 2, kind: input, shape index: {}]
  %s3 = inlined_call_operand.vmem [shape: f32[1,128], index: 3, kind: input, shape index: {}]
  %s4 = inlined_call_operand.vmem [shape: f32[9,128], index: 4, kind: input, shape index: {}]
  %s5 = inlined_call_operand.vmem [shape: f32[1,128], index: 5, kind: input, shape index: {}]
  %s6 = inlined_call_operand.vmem [shape: f32[1,128], index: 6, kind: input, shape index: {}]
  %s7 = inlined_call_operand.vmem [shape: f32[128,128], index: 7, kind: input, shape index: {}]
  %s8 = inlined_call_operand.vmem [shape: f32[1,128], index: 8, kind: input, shape index: {}]
  %s9 = inlined_call_operand.vmem [shape: f32[1,128], index: 9, kind: input, shape index: {}]
  %s10 = inlined_call_operand.vmem [shape: f32[128,128], index: 10, kind: input, shape index: {}]
  %s11 = inlined_call_operand.vmem [shape: f32[1,128], index: 11, kind: input, shape index: {}]
  %s12 = inlined_call_operand.vmem [shape: f32[1,128], index: 12, kind: input, shape index: {}]
  %s13 = inlined_call_operand.hbm [shape: f32[2,16,16,128], index: 13, kind: output, shape index: {}]
  %s14 = sld [smem:[#allocation0]]
  $region85: #{tpu_custom_call.1} parent=0
    _
  %s16 = ssub.s32 1, %s14
  %s17 = scalar_select 0, %s16, %s14
  $region1: #{tpu_custom_call.1} parent=0
    #allocation2 [shape = 'u8[131072]{0}', space=vmem, size = 0x20000, scoped, tag = 'output window, operand 0']
    #allocation3 [shape = 's32[2]{0}', space=sflag, size = 0x8, scoped, tag = 'scoped memory for tpu_custom_call.1']
    %18 = vsyncpa [#allocation3], 0
    %s19 = scalar_lea.sflag [#allocation3], 1
    %20 = vsyncpa %s19, 0
    loop: start=0, step=1, limit=6
    $region2: #{tpu_custom_call.1} parent=1 // loop_pre_header
      _
    $region3: #{tpu_custom_call.1} parent=1 // loop_header
      %s22 = sphi 0, %s26
      %p23 = scmp.ge.s32.totalorder %s22, 6
      %s29 = sphi 0, %s41
      %s30 = sphi 0, %s37
      %s31 = sphi 0, %s29
      %s32 = sphi 0, %s30
      %s33 = sphi 0, %s31
      %s34 = sphi 0, %s32
      %s44 = sphi 0, %s46
      %s47 = sphi 0, %s44
      %s48 = sphi 0, %s47
      %s64 = sphi 0, %s48
      %s68 = sphi 0, %s68
      %s70 = sphi 0, %s68
      %s71 = sphi 0, %s70
      %s85 = sphi 0, %s71
      %s89 = sphi 0, %s89
      %s91 = sphi 0, %s89
      %s92 = sphi 0, %s91
      %s106 = sphi 0, %s92
      %s110 = sphi 0, %s110
      %s112 = sphi 0, %s110
      %s113 = sphi 0, %s112
      %s127 = sphi 0, %s113
      %s131 = sphi 0, %s131
      %s133 = sphi 0, %s131
      %s134 = sphi 0, %s133
      %s148 = sphi 0, %s134
      %s152 = sphi 0, %s152
      %s154 = sphi 0, %s152
      %s155 = sphi 0, %s154
      %s169 = sphi 0, %s155
      %s173 = sphi 0, %s173
      %s175 = sphi 0, %s173
      %s176 = sphi 0, %s175
      %s190 = sphi 0, %s176
      %s194 = sphi 0, %s194
      %s196 = sphi 0, %s194
      %s197 = sphi 0, %s196
      %s211 = sphi 0, %s197
      %s215 = sphi 0, %s215
      %s217 = sphi 0, %s215
      %s218 = sphi 0, %s217
      %s232 = sphi 0, %s218
      %s236 = sphi 0, %s236
      %s238 = sphi 0, %s236
      %s239 = sphi 0, %s238
      %s253 = sphi 0, %s239
      %s257 = sphi 0, %s257
      %s259 = sphi 0, %s257
      %s260 = sphi 0, %s259
      %s274 = sphi 0, %s260
      %s278 = sphi 0, %s278
      %s280 = sphi 0, %s278
      %s281 = sphi 0, %s280
      %s295 = sphi 0, %s281
      %s299 = sphi 0, %s299
      %s301 = sphi 0, %s299
      %s302 = sphi 0, %s301
      %s316 = sphi 0, %s302
      %s324 = sphi 0, %s326
      %s327 = sphi 0, %s324
      %s328 = sphi 0, %s327
      %s344 = sphi 0, %s328
    $region4: #{tpu_custom_call.1} parent=1 // loop_header_branch
      %25 = sbr.rel (%p23) target = $region8
    $region5: #{tpu_custom_call.1} parent=1 // loop_body
      %s27 = ssub.s32 %s22, 1
      %s28 = ssub.s32 %s22, 2
      %s35 = sadd.s32 1, %s30
      %p36 = scmp.ge.s32.totalorder %s35, 2
      %s37 = scalar_select %p36, 0, %s35
      %s38 = sadd.s32 1, %s29
      %s39 = scalar_select %p36, %s38, %s29
      %p40 = scmp.ge.s32.totalorder %s39, 2
      %s41 = scalar_select %p40, 0, %s39
      %s42 = ssub.s32 %s29, %s41
      %p43 = scmp.eq.s32.totalorder %s42, 0
      %s45 = sadd.s32 %s44, 1
      %s46 = scalar_select %p43, %s44, %s45
      %p49 = pneg %p43
      %p50 = scmp.eq.s32.totalorder %s22, 3
      %p51 = por %p49, %p50
      %p52 = scmp.ne.s32.totalorder %s44, %s47
      %p53 = scmp.eq.s32.totalorder %s22, 0
      %p54 = por %p52, %p53
      %p55 = scmp.ne.s32.totalorder %s44, %s47
      %p56 = scmp.eq.s32.totalorder %s27, 3
      %p57 = por %p55, %p56
      %p58 = scmp.ne.s32.totalorder %s47, %s48
      %p59 = scmp.eq.s32.totalorder %s27, 0
      %p60 = por %p58, %p59
      %p61 = scmp.ne.s32.totalorder %s47, %s48
      %p62 = scmp.eq.s32.totalorder %s28, 3
      %p63 = por %p61, %p62
      %p65 = scmp.ne.s32.totalorder %s48, %s64
      %p66 = scmp.eq.s32.totalorder %s28, 0
      %p67 = por %p65, %p66
      %s69 = sadd.s32 %s68, 1
      %p72 = scmp.eq.s32.totalorder %s22, 3
      %p73 = scmp.ne.s32.totalorder %s68, %s70
      %p74 = scmp.eq.s32.totalorder %s22, 0
      %p75 = por %p73, %p74
      %p76 = scmp.ne.s32.totalorder %s68, %s70
      %p77 = scmp.eq.s32.totalorder %s27, 3
      %p78 = por %p76, %p77
      %p79 = scmp.ne.s32.totalorder %s70, %s71
      %p80 = scmp.eq.s32.totalorder %s27, 0
      %p81 = por %p79, %p80
      %p82 = scmp.ne.s32.totalorder %s70, %s71
      %p83 = scmp.eq.s32.totalorder %s28, 3
      %p84 = por %p82, %p83
      %p86 = scmp.ne.s32.totalorder %s71, %s85
      %p87 = scmp.eq.s32.totalorder %s28, 0
      %p88 = por %p86, %p87
      %s90 = sadd.s32 %s89, 1
      %p93 = scmp.eq.s32.totalorder %s22, 3
      %p94 = scmp.ne.s32.totalorder %s89, %s91
      %p95 = scmp.eq.s32.totalorder %s22, 0
      %p96 = por %p94, %p95
      %p97 = scmp.ne.s32.totalorder %s89, %s91
      %p98 = scmp.eq.s32.totalorder %s27, 3
      %p99 = por %p97, %p98
      %p100 = scmp.ne.s32.totalorder %s91, %s92
      %p101 = scmp.eq.s32.totalorder %s27, 0
      %p102 = por %p100, %p101
      %p103 = scmp.ne.s32.totalorder %s91, %s92
      %p104 = scmp.eq.s32.totalorder %s28, 3
      %p105 = por %p103, %p104
      %p107 = scmp.ne.s32.totalorder %s92, %s106
      %p108 = scmp.eq.s32.totalorder %s28, 0
      %p109 = por %p107, %p108
      %s111 = sadd.s32 %s110, 1
      %p114 = scmp.eq.s32.totalorder %s22, 3
      %p115 = scmp.ne.s32.totalorder %s110, %s112
      %p116 = scmp.eq.s32.totalorder %s22, 0
      %p117 = por %p115, %p116
      %p118 = scmp.ne.s32.totalorder %s110, %s112
      %p119 = scmp.eq.s32.totalorder %s27, 3
      %p120 = por %p118, %p119
      %p121 = scmp.ne.s32.totalorder %s112, %s113
      %p122 = scmp.eq.s32.totalorder %s27, 0
      %p123 = por %p121, %p122
      %p124 = scmp.ne.s32.totalorder %s112, %s113
      %p125 = scmp.eq.s32.totalorder %s28, 3
      %p126 = por %p124, %p125
      %p128 = scmp.ne.s32.totalorder %s113, %s127
      %p129 = scmp.eq.s32.totalorder %s28, 0
      %p130 = por %p128, %p129
      %s132 = sadd.s32 %s131, 1
      %p135 = scmp.eq.s32.totalorder %s22, 3
      %p136 = scmp.ne.s32.totalorder %s131, %s133
      %p137 = scmp.eq.s32.totalorder %s22, 0
      %p138 = por %p136, %p137
      %p139 = scmp.ne.s32.totalorder %s131, %s133
      %p140 = scmp.eq.s32.totalorder %s27, 3
      %p141 = por %p139, %p140
      %p142 = scmp.ne.s32.totalorder %s133, %s134
      %p143 = scmp.eq.s32.totalorder %s27, 0
      %p144 = por %p142, %p143
      %p145 = scmp.ne.s32.totalorder %s133, %s134
      %p146 = scmp.eq.s32.totalorder %s28, 3
      %p147 = por %p145, %p146
      %p149 = scmp.ne.s32.totalorder %s134, %s148
      %p150 = scmp.eq.s32.totalorder %s28, 0
      %p151 = por %p149, %p150
      %s153 = sadd.s32 %s152, 1
      %p156 = scmp.eq.s32.totalorder %s22, 3
      %p157 = scmp.ne.s32.totalorder %s152, %s154
      %p158 = scmp.eq.s32.totalorder %s22, 0
      %p159 = por %p157, %p158
      %p160 = scmp.ne.s32.totalorder %s152, %s154
      %p161 = scmp.eq.s32.totalorder %s27, 3
      %p162 = por %p160, %p161
      %p163 = scmp.ne.s32.totalorder %s154, %s155
      %p164 = scmp.eq.s32.totalorder %s27, 0
      %p165 = por %p163, %p164
      %p166 = scmp.ne.s32.totalorder %s154, %s155
      %p167 = scmp.eq.s32.totalorder %s28, 3
      %p168 = por %p166, %p167
      %p170 = scmp.ne.s32.totalorder %s155, %s169
      %p171 = scmp.eq.s32.totalorder %s28, 0
      %p172 = por %p170, %p171
      %s174 = sadd.s32 %s173, 1
      %p177 = scmp.eq.s32.totalorder %s22, 3
      %p178 = scmp.ne.s32.totalorder %s173, %s175
      %p179 = scmp.eq.s32.totalorder %s22, 0
      %p180 = por %p178, %p179
      %p181 = scmp.ne.s32.totalorder %s173, %s175
      %p182 = scmp.eq.s32.totalorder %s27, 3
      %p183 = por %p181, %p182
      %p184 = scmp.ne.s32.totalorder %s175, %s176
      %p185 = scmp.eq.s32.totalorder %s27, 0
      %p186 = por %p184, %p185
      %p187 = scmp.ne.s32.totalorder %s175, %s176
      %p188 = scmp.eq.s32.totalorder %s28, 3
      %p189 = por %p187, %p188
      %p191 = scmp.ne.s32.totalorder %s176, %s190
      %p192 = scmp.eq.s32.totalorder %s28, 0
      %p193 = por %p191, %p192
      %s195 = sadd.s32 %s194, 1
      %p198 = scmp.eq.s32.totalorder %s22, 3
      %p199 = scmp.ne.s32.totalorder %s194, %s196
      %p200 = scmp.eq.s32.totalorder %s22, 0
      %p201 = por %p199, %p200
      %p202 = scmp.ne.s32.totalorder %s194, %s196
      %p203 = scmp.eq.s32.totalorder %s27, 3
      %p204 = por %p202, %p203
      %p205 = scmp.ne.s32.totalorder %s196, %s197
      %p206 = scmp.eq.s32.totalorder %s27, 0
      %p207 = por %p205, %p206
      %p208 = scmp.ne.s32.totalorder %s196, %s197
      %p209 = scmp.eq.s32.totalorder %s28, 3
      %p210 = por %p208, %p209
      %p212 = scmp.ne.s32.totalorder %s197, %s211
      %p213 = scmp.eq.s32.totalorder %s28, 0
      %p214 = por %p212, %p213
      %s216 = sadd.s32 %s215, 1
      %p219 = scmp.eq.s32.totalorder %s22, 3
      %p220 = scmp.ne.s32.totalorder %s215, %s217
      %p221 = scmp.eq.s32.totalorder %s22, 0
      %p222 = por %p220, %p221
      %p223 = scmp.ne.s32.totalorder %s215, %s217
      %p224 = scmp.eq.s32.totalorder %s27, 3
      %p225 = por %p223, %p224
      %p226 = scmp.ne.s32.totalorder %s217, %s218
      %p227 = scmp.eq.s32.totalorder %s27, 0
      %p228 = por %p226, %p227
      %p229 = scmp.ne.s32.totalorder %s217, %s218
      %p230 = scmp.eq.s32.totalorder %s28, 3
      %p231 = por %p229, %p230
      %p233 = scmp.ne.s32.totalorder %s218, %s232
      %p234 = scmp.eq.s32.totalorder %s28, 0
      %p235 = por %p233, %p234
      %s237 = sadd.s32 %s236, 1
      %p240 = scmp.eq.s32.totalorder %s22, 3
      %p241 = scmp.ne.s32.totalorder %s236, %s238
      %p242 = scmp.eq.s32.totalorder %s22, 0
      %p243 = por %p241, %p242
      %p244 = scmp.ne.s32.totalorder %s236, %s238
      %p245 = scmp.eq.s32.totalorder %s27, 3
      %p246 = por %p244, %p245
      %p247 = scmp.ne.s32.totalorder %s238, %s239
      %p248 = scmp.eq.s32.totalorder %s27, 0
      %p249 = por %p247, %p248
      %p250 = scmp.ne.s32.totalorder %s238, %s239
      %p251 = scmp.eq.s32.totalorder %s28, 3
      %p252 = por %p250, %p251
      %p254 = scmp.ne.s32.totalorder %s239, %s253
      %p255 = scmp.eq.s32.totalorder %s28, 0
      %p256 = por %p254, %p255
      %s258 = sadd.s32 %s257, 1
      %p261 = scmp.eq.s32.totalorder %s22, 3
      %p262 = scmp.ne.s32.totalorder %s257, %s259
      %p263 = scmp.eq.s32.totalorder %s22, 0
      %p264 = por %p262, %p263
      %p265 = scmp.ne.s32.totalorder %s257, %s259
      %p266 = scmp.eq.s32.totalorder %s27, 3
      %p267 = por %p265, %p266
      %p268 = scmp.ne.s32.totalorder %s259, %s260
      %p269 = scmp.eq.s32.totalorder %s27, 0
      %p270 = por %p268, %p269
      %p271 = scmp.ne.s32.totalorder %s259, %s260
      %p272 = scmp.eq.s32.totalorder %s28, 3
      %p273 = por %p271, %p272
      %p275 = scmp.ne.s32.totalorder %s260, %s274
      %p276 = scmp.eq.s32.totalorder %s28, 0
      %p277 = por %p275, %p276
      %s279 = sadd.s32 %s278, 1
      %p282 = scmp.eq.s32.totalorder %s22, 3
      %p283 = scmp.ne.s32.totalorder %s278, %s280
      %p284 = scmp.eq.s32.totalorder %s22, 0
      %p285 = por %p283, %p284
      %p286 = scmp.ne.s32.totalorder %s278, %s280
      %p287 = scmp.eq.s32.totalorder %s27, 3
      %p288 = por %p286, %p287
      %p289 = scmp.ne.s32.totalorder %s280, %s281
      %p290 = scmp.eq.s32.totalorder %s27, 0
      %p291 = por %p289, %p290
      %p292 = scmp.ne.s32.totalorder %s280, %s281
      %p293 = scmp.eq.s32.totalorder %s28, 3
      %p294 = por %p292, %p293
      %p296 = scmp.ne.s32.totalorder %s281, %s295
      %p297 = scmp.eq.s32.totalorder %s28, 0
      %p298 = por %p296, %p297
      %s300 = sadd.s32 %s299, 1
      %p303 = scmp.eq.s32.totalorder %s22, 3
      %p304 = scmp.ne.s32.totalorder %s299, %s301
      %p305 = scmp.eq.s32.totalorder %s22, 0
      %p306 = por %p304, %p305
      %p307 = scmp.ne.s32.totalorder %s299, %s301
      %p308 = scmp.eq.s32.totalorder %s27, 3
      %p309 = por %p307, %p308
      %p310 = scmp.ne.s32.totalorder %s301, %s302
      %p311 = scmp.eq.s32.totalorder %s27, 0
      %p312 = por %p310, %p311
      %p313 = scmp.ne.s32.totalorder %s301, %s302
      %p314 = scmp.eq.s32.totalorder %s28, 3
      %p315 = por %p313, %p314
      %p317 = scmp.ne.s32.totalorder %s302, %s316
      %p318 = scmp.eq.s32.totalorder %s28, 0
      %p319 = por %p317, %p318
      %s320 = ssub.s32 %s29, %s41
      %s321 = ssub.s32 %s30, %s37
      %s322 = sor.u32 %s320, %s321
      %p323 = scmp.eq.s32.totalorder %s322, 0
      %s325 = sadd.s32 %s324, 1
      %s326 = scalar_select %p323, %s324, %s325
      %p329 = pneg %p323
      %p330 = scmp.eq.s32.totalorder %s22, 3
      %p331 = por %p329, %p330
      %p332 = scmp.ne.s32.totalorder %s324, %s327
      %p333 = scmp.eq.s32.totalorder %s22, 0
      %p334 = por %p332, %p333
      %p335 = scmp.ne.s32.totalorder %s324, %s327
      %p336 = scmp.eq.s32.totalorder %s27, 3
      %p337 = por %p335, %p336
      %p338 = scmp.ne.s32.totalorder %s327, %s328
      %p339 = scmp.eq.s32.totalorder %s27, 0
      %p340 = por %p338, %p339
      %p341 = scmp.ne.s32.totalorder %s327, %s328
      %p342 = scmp.eq.s32.totalorder %s28, 3
      %p343 = por %p341, %p342
      %p345 = scmp.ne.s32.totalorder %s328, %s344
      %p346 = scmp.eq.s32.totalorder %s28, 0
      %p347 = por %p345, %p346
      %p348 = scmp.le.s32.totalorder 1, %s22
      %p349 = scmp.lt.s32.totalorder %s22, 5
      %p350 = pnand %p348, %p349
      %p351 = pneg %p350
      // Predicated region
      $region9: #{tpu_custom_call.1} parent=5 // pred_check
        _
      $region10: #{tpu_custom_call.1} parent=5 // pred_check_branch
        %353 = sbr.rel (%p350) target = $region12
      $region11: #{tpu_custom_call.1} parent=5 // pred_region
        %s354 = ssub.s32 %s22, 1
        // Predicated region
        $region13: #{tpu_custom_call.1} parent=11 // pred_check
          %p355 = pneg %p81
        $region14: #{tpu_custom_call.1} parent=11 // pred_check_branch
          %357 = sbr.rel (%p355) target = $region16
        $region15: #{tpu_custom_call.1} parent=11 // pred_region
          _
        $region16: #{tpu_custom_call.1} parent=11 // pred_fallthru
          _
        // Predicated region
        $region17: #{tpu_custom_call.1} parent=11 // pred_check
          %p358 = pneg %p102
        $region18: #{tpu_custom_call.1} parent=11 // pred_check_branch
          %360 = sbr.rel (%p358) target = $region20
        $region19: #{tpu_custom_call.1} parent=11 // pred_region
          _
        $region20: #{tpu_custom_call.1} parent=11 // pred_fallthru
          _
        // Predicated region
        $region21: #{tpu_custom_call.1} parent=11 // pred_check
          %p361 = pneg %p123
        $region22: #{tpu_custom_call.1} parent=11 // pred_check_branch
          %363 = sbr.rel (%p361) target = $region24
        $region23: #{tpu_custom_call.1} parent=11 // pred_region
          _
        $region24: #{tpu_custom_call.1} parent=11 // pred_fallthru
          _
        // Predicated region
        $region25: #{tpu_custom_call.1} parent=11 // pred_check
          %p364 = pneg %p144
        $region26: #{tpu_custom_call.1} parent=11 // pred_check_branch
          %366 = sbr.rel (%p364) target = $region28
        $region27: #{tpu_custom_call.1} parent=11 // pred_region
          _
        $region28: #{tpu_custom_call.1} parent=11 // pred_fallthru
          _
        // Predicated region
        $region29: #{tpu_custom_call.1} parent=11 // pred_check
          %p367 = pneg %p165
        $region30: #{tpu_custom_call.1} parent=11 // pred_check_branch
          %369 = sbr.rel (%p367) target = $region32
        $region31: #{tpu_custom_call.1} parent=11 // pred_region
          _
        $region32: #{tpu_custom_call.1} parent=11 // pred_fallthru
          _
        // Predicated region
        $region33: #{tpu_custom_call.1} parent=11 // pred_check
          %p370 = pneg %p186
        $region34: #{tpu_custom_call.1} parent=11 // pred_check_branch
          %372 = sbr.rel (%p370) target = $region36
        $region35: #{tpu_custom_call.1} parent=11 // pred_region
          _
        $region36: #{tpu_custom_call.1} parent=11 // pred_fallthru
          _
        // Predicated region
        $region37: #{tpu_custom_call.1} parent=11 // pred_check
          %p373 = pneg %p207
        $region38: #{tpu_custom_call.1} parent=11 // pred_check_branch
          %375 = sbr.rel (%p373) target = $region40
        $region39: #{tpu_custom_call.1} parent=11 // pred_region
          _
        $region40: #{tpu_custom_call.1} parent=11 // pred_fallthru
          _
        // Predicated region
        $region41: #{tpu_custom_call.1} parent=11 // pred_check
          %p376 = pneg %p228
        $region42: #{tpu_custom_call.1} parent=11 // pred_check_branch
          %378 = sbr.rel (%p376) target = $region44
        $region43: #{tpu_custom_call.1} parent=11 // pred_region
          _
        $region44: #{tpu_custom_call.1} parent=11 // pred_fallthru
          _
        // Predicated region
        $region45: #{tpu_custom_call.1} parent=11 // pred_check
          %p379 = pneg %p249
        $region46: #{tpu_custom_call.1} parent=11 // pred_check_branch
          %381 = sbr.rel (%p379) target = $region48
        $region47: #{tpu_custom_call.1} parent=11 // pred_region
          _
        $region48: #{tpu_custom_call.1} parent=11 // pred_fallthru
          _
        // Predicated region
        $region49: #{tpu_custom_call.1} parent=11 // pred_check
          %p382 = pneg %p270
        $region50: #{tpu_custom_call.1} parent=11 // pred_check_branch
          %384 = sbr.rel (%p382) target = $region52
        $region51: #{tpu_custom_call.1} parent=11 // pred_region
          _
        $region52: #{tpu_custom_call.1} parent=11 // pred_fallthru
          _
        // Predicated region
        $region53: #{tpu_custom_call.1} parent=11 // pred_check
          %p385 = pneg %p291
        $region54: #{tpu_custom_call.1} parent=11 // pred_check_branch
          %387 = sbr.rel (%p385) target = $region56
        $region55: #{tpu_custom_call.1} parent=11 // pred_region
          _
        $region56: #{tpu_custom_call.1} parent=11 // pred_fallthru
          _
        // Predicated region
        $region57: #{tpu_custom_call.1} parent=11 // pred_check
          %p388 = pneg %p312
        $region58: #{tpu_custom_call.1} parent=11 // pred_check_branch
          %390 = sbr.rel (%p388) target = $region60
        $region59: #{tpu_custom_call.1} parent=11 // pred_region
          _
        $region60: #{tpu_custom_call.1} parent=11 // pred_fallthru
          _
      $region12: #{tpu_custom_call.1} parent=5 // pred_fallthru
        _
      %p391 = scmp.lt.s32.totalorder %s22, 4
      // Predicated region
      $region61: #{tpu_custom_call.1} parent=5 // pred_check
        %p392 = pneg %p391
      $region62: #{tpu_custom_call.1} parent=5 // pred_check_branch
        %394 = sbr.rel (%p392) target = $region64
      $region63: #{tpu_custom_call.1} parent=5 // pred_region
        // Predicated region
        $region65: #{tpu_custom_call.1} parent=63 // pred_check
          %p395 = pneg %p54
        $region66: #{tpu_custom_call.1} parent=63 // pred_check_branch
          %397 = sbr.rel (%p395) target = $region68
        $region67: #{tpu_custom_call.1} parent=63 // pred_region
          %p398 = scmp.lt.s32.totalorder %s29, 1
          %s399 = scalar_select %p398, %s29, 1
          %s400 = smul.addr %s399, 54
          %s401 = smul.addr %s400, 8
          %s402 = scalar_lea.vmem %s0, %s401
        $region68: #{tpu_custom_call.1} parent=63 // pred_fallthru
          _
      $region64: #{tpu_custom_call.1} parent=5 // pred_fallthru
        _
      %p403 = scmp.le.s32.totalorder 1, %s22
      %p404 = scmp.lt.s32.totalorder %s22, 5
      %p405 = pnand %p403, %p404
      %p406 = pneg %p405
      // Predicated region
      $region69: #{tpu_custom_call.1} parent=5 // pred_check
        _
      $region70: #{tpu_custom_call.1} parent=5 // pred_check_branch
        %408 = sbr.rel (%p405) target = $region72
      $region71: #{tpu_custom_call.1} parent=5 // pred_region
        %s409 = ssub.s32 %s22, 1
        %p410 = scmp.lt.s32.totalorder %s31, 1
        %s411 = scalar_select %p410, %s31, 1
        %s412 = smul.addr %s411, 54
        %s413 = smul.addr %s412, 8
        %s414 = scalar_lea.vmem %s0, %s413
        %p415 = pneg %p60
        %p416 = pneg %p57
        %p417 = pneg %p81
        %p418 = pneg %p78
        %p419 = pneg %p102
        %p420 = pneg %p99
        %p421 = pneg %p123
        %p422 = pneg %p120
        %p423 = pneg %p144
        %p424 = pneg %p141
        %p425 = pneg %p165
        %p426 = pneg %p162
        %p427 = pneg %p186
        %p428 = pneg %p183
        %p429 = pneg %p207
        %p430 = pneg %p204
        %p431 = pneg %p228
        %p432 = pneg %p225
        %p433 = pneg %p249
        %p434 = pneg %p246
        %p435 = pneg %p270
        %p436 = pneg %p267
        %p437 = pneg %p291
        %p438 = pneg %p288
        %p439 = pneg %p312
        %p440 = pneg %p309
        %p441 = pneg %p340
        %p442 = pneg %p337
        %s443 = sand.u32 %s327, 1
        %s444 = scalar_lea.sflag [#allocation3], %s443
        %s445 = sand.u32 %s327, 1
        %s446 = smul.addr %s445, 128
        %s447 = scalar_lea.vmem [#allocation2], %s446
        %p448 = scmp.lt.s32.totalorder %s31, 1
        %s449 = scalar_select %p448, %s31, 1
        %s450 = smul.addr %s449, 54
        %s451 = smul.addr %s450, 8
        %s452 = scalar_lea.vmem %s0, %s451
        %s453 = smul.u32 8, %s32
        %s454 = smul.u32 %s32, 8
        %s455 = smul.u32 %s454, 24
        %s456 = scalar_lea.vmem %s452, %s455
        %v457 = vld [vmem:[%s456] sm:$0xff]
        %v458 = vld [vmem:[%s456 + $0x8] sm:$0xff]
        %v459 = vld [vmem:[%s456 + $0x10] sm:$0x3]
        %v460 = vld [vmem:[%s456 + $0x18] sm:$0xff]
        %v461 = vld [vmem:[%s456 + $0x20] sm:$0xff]
        %v462 = vld [vmem:[%s456 + $0x28] sm:$0x3]
        %v463 = vld [vmem:[%s456 + $0x30] sm:$0xff]
        %v464 = vld [vmem:[%s456 + $0x38] sm:$0xff]
        %v465 = vld [vmem:[%s456 + $0x40] sm:$0x3]
        %v466 = vld [vmem:[%s456 + $0x48] sm:$0xff]
        %v467 = vld [vmem:[%s456 + $0x50] sm:$0xff]
        %v468 = vld [vmem:[%s456 + $0x58] sm:$0x3]
        %v469 = vld [vmem:[%s456 + $0x60] sm:$0xff]
        %v470 = vld [vmem:[%s456 + $0x68] sm:$0xff]
        %v471 = vld [vmem:[%s456 + $0x70] sm:$0x3]
        %v472 = vld [vmem:[%s456 + $0x78] sm:$0xff]
        %v473 = vld [vmem:[%s456 + $0x80] sm:$0xff]
        %v474 = vld [vmem:[%s456 + $0x88] sm:$0x3]
        %v475 = vld [vmem:[%s456 + $0x90] sm:$0xff]
        %v476 = vld [vmem:[%s456 + $0x98] sm:$0xff]
        %v477 = vld [vmem:[%s456 + $0xa0] sm:$0x3]
        %v478 = vld [vmem:[%s456 + $0xa8] sm:$0xff]
        %v479 = vld [vmem:[%s456 + $0xb0] sm:$0xff]
        %v480 = vld [vmem:[%s456 + $0xb8] sm:$0x3]
        %v481 = vld [vmem:[%s456 + $0xc0] sm:$0xff]
        %v482 = vld [vmem:[%s456 + $0xc8] sm:$0xff]
        %v483 = vld [vmem:[%s456 + $0xd0] sm:$0x3]
        %v484 = vld [vmem:[%s456 + $0xd8] sm:$0xff]
        %v485 = vld [vmem:[%s456 + $0xe0] sm:$0xff]
        %v486 = vld [vmem:[%s456 + $0xe8] sm:$0x3]
        %v517 = vrot.slane %v457, 2
        %v518 = vrot.slane %v457, 4
        %v519 = vrot.slane %v457, 6
        %v520 = vrot.slane %v458, 2
        %v521 = vrot.slane %v458, 4
        %v522 = vrot.slane %v458, 6
        %v523 = vrot.slane %v460, 2
        %v524 = vrot.slane %v460, 4
        %v525 = vrot.slane %v460, 6
        %v526 = vrot.slane %v461, 2
        %v527 = vrot.slane %v461, 4
        %v528 = vrot.slane %v461, 6
        %v529 = vrot.slane %v463, 2
        %v530 = vrot.slane %v463, 4
        %v531 = vrot.slane %v463, 6
        %v532 = vrot.slane %v464, 2
        %v533 = vrot.slane %v464, 4
        %v534 = vrot.slane %v464, 6
        %v535 = vrot.slane %v466, 2
        %v536 = vrot.slane %v466, 4
        %v537 = vrot.slane %v466, 6
        %v538 = vrot.slane %v467, 2
        %v539 = vrot.slane %v467, 4
        %v540 = vrot.slane %v467, 6
        %v541 = vrot.slane %v469, 2
        %v542 = vrot.slane %v469, 4
        %v543 = vrot.slane %v469, 6
        %v544 = vrot.slane %v470, 2
        %v545 = vrot.slane %v470, 4
        %v546 = vrot.slane %v470, 6
        %v547 = vrot.slane %v472, 2
        %v548 = vrot.slane %v472, 4
        %v549 = vrot.slane %v472, 6
        %v550 = vrot.slane %v473, 2
        %v551 = vrot.slane %v473, 4
        %v552 = vrot.slane %v473, 6
        %v553 = vrot.slane %v475, 2
        %v554 = vrot.slane %v475, 4
        %v555 = vrot.slane %v475, 6
        %v556 = vrot.slane %v476, 2
        %v557 = vrot.slane %v476, 4
        %v558 = vrot.slane %v476, 6
        %v559 = vrot.slane %v478, 2
        %v560 = vrot.slane %v478, 4
        %v561 = vrot.slane %v478, 6
        %v562 = vrot.slane %v479, 2
        %v563 = vrot.slane %v479, 4
        %v564 = vrot.slane %v479, 6
        %v565 = vrot.slane %v481, 2
        %v566 = vrot.slane %v481, 4
        %v567 = vrot.slane %v481, 6
        %v568 = vrot.slane %v482, 2
        %v569 = vrot.slane %v482, 4
        %v570 = vrot.slane %v482, 6
        %v571 = vrot.slane %v484, 2
        %v572 = vrot.slane %v484, 4
        %v573 = vrot.slane %v484, 6
        %v574 = vrot.slane %v485, 2
        %v575 = vrot.slane %v485, 4
        %v576 = vrot.slane %v485, 6
        %v577 = vld [vmem:[%s1] sm:$0xff]
        %v578 = vld [vmem:[%s1 + $0x8] sm:$0xff]
        %v579 = vld [vmem:[%s1 + $0x10] sm:$0xff]
        %v580 = vld [vmem:[%s1 + $0x18] sm:$0xff]
        %v581 = vld [vmem:[%s1 + $0x20] sm:$0xff]
        %v582 = vld [vmem:[%s1 + $0x28] sm:$0xff]
        %v583 = vld [vmem:[%s1 + $0x30] sm:$0xff]
        %v584 = vld [vmem:[%s1 + $0x38] sm:$0xff]
        %v585 = vld [vmem:[%s1 + $0x40] sm:$0xff]
        %v586 = vld [vmem:[%s1 + $0x48] sm:$0xff]
        %v587 = vld [vmem:[%s1 + $0x50] sm:$0xff]
        %v588 = vld [vmem:[%s1 + $0x58] sm:$0xff]
        %v589 = vld [vmem:[%s1 + $0x60] sm:$0xff]
        %v590 = vld [vmem:[%s1 + $0x68] sm:$0xff]
        %v591 = vld [vmem:[%s1 + $0x70] sm:$0xff]
        %v592 = vld [vmem:[%s1 + $0x78] sm:$0xff]
        %593 = vst [vmem:[#allocation1] ss:$4 sm:$0xff] %v457
        %s594 = scalar_lea.vmem [#allocation1], 1
        %595 = vst [vmem:[%s594] ss:$4 sm:$0xff] %v517
        %s596 = scalar_lea.vmem [#allocation1], 2
        %597 = vst [vmem:[%s596] ss:$4 sm:$0xff] %v518
        %s598 = scalar_lea.vmem [#allocation1], 3
        %599 = vst [vmem:[%s598] ss:$4 sm:$0xff] %v519
        %s600 = scalar_lea.vmem [#allocation1], 32
        %601 = vst [vmem:[%s600] ss:$4 sm:$0xff] %v458
        %s602 = scalar_lea.vmem [#allocation1], 33
        %603 = vst [vmem:[%s602] ss:$4 sm:$0xff] %v520
        %s604 = scalar_lea.vmem [#allocation1], 34
        %605 = vst [vmem:[%s604] ss:$4 sm:$0xff] %v521
        %s606 = scalar_lea.vmem [#allocation1], 35
        %607 = vst [vmem:[%s606] ss:$4 sm:$0xff] %v522
        %v608 = vld.sshfl [vmem:[#allocation1] sm:$0xff pattern:$0x73625140]
        %v609 = vld.sshfl [vmem:[#allocation1 + $0x20] sm:$0xff pattern:$0x73625140]
        %610 = vst [vmem:[#allocation1] ss:$4 sm:$0xff] %v459
        %611 = vst [vmem:[%s594] ss:$4 sm:$0xff] %v460
        %612 = vst [vmem:[%s596] ss:$4 sm:$0xff] %v523
        %613 = vst [vmem:[%s598] ss:$4 sm:$0xff] %v524
        %614 = vst [vmem:[%s600] ss:$4 sm:$0xff] %v525
        %615 = vst [vmem:[%s602] ss:$4 sm:$0xff] %v461
        %616 = vst [vmem:[%s604] ss:$4 sm:$0xff] %v526
        %617 = vst [vmem:[%s606] ss:$4 sm:$0xff] %v527
        %v618 = vld.sshfl [vmem:[#allocation1] sm:$0xff pattern:$0x73625140]
        %v619 = vld.sshfl [vmem:[#allocation1 + $0x20] sm:$0xff pattern:$0x73625140]
        %620 = vst [vmem:[#allocation1] ss:$4 sm:$0xff] %v528
        %621 = vst [vmem:[%s594] ss:$4 sm:$0xff] %v462
        %622 = vst [vmem:[%s596] ss:$4 sm:$0xff] %v463
        %623 = vst [vmem:[%s598] ss:$4 sm:$0xff] %v529
        %624 = vst [vmem:[%s600] ss:$4 sm:$0xff] %v530
        %625 = vst [vmem:[%s602] ss:$4 sm:$0xff] %v531
        %626 = vst [vmem:[%s604] ss:$4 sm:$0xff] %v464
        %627 = vst [vmem:[%s606] ss:$4 sm:$0xff] %v532
        %v628 = vld.sshfl [vmem:[#allocation1] sm:$0xff pattern:$0x73625140]
        %v629 = vld.sshfl [vmem:[#allocation1 + $0x20] sm:$0xff pattern:$0x73625140]
        %630 = vst [vmem:[#allocation1] ss:$4 sm:$0xff] %v533
        %631 = vst [vmem:[%s594] ss:$4 sm:$0xff] %v534
        %632 = vst [vmem:[%s596] ss:$4 sm:$0xff] %v465
        %633 = vst [vmem:[%s598] ss:$4 sm:$0xff] %v466
        %634 = vst [vmem:[%s600] ss:$4 sm:$0xff] %v535
        %635 = vst [vmem:[%s602] ss:$4 sm:$0xff] %v536
        %636 = vst [vmem:[%s604] ss:$4 sm:$0xff] %v537
        %637 = vst [vmem:[%s606] ss:$4 sm:$0xff] %v467
        %v638 = vld.sshfl [vmem:[#allocation1] sm:$0xff pattern:$0x73625140]
        %v639 = vld.sshfl [vmem:[#allocation1 + $0x20] sm:$0xff pattern:$0x73625140]
        %640 = vst [vmem:[#allocation1] ss:$4 sm:$0xff] %v538
        %641 = vst [vmem:[%s594] ss:$4 sm:$0xff] %v539
        %642 = vst [vmem:[%s596] ss:$4 sm:$0xff] %v540
        %643 = vst [vmem:[%s598] ss:$4 sm:$0xff] %v468
        %644 = vst [vmem:[%s600] ss:$4 sm:$0xff] %v469
        %645 = vst [vmem:[%s602] ss:$4 sm:$0xff] %v541
        %646 = vst [vmem:[%s604] ss:$4 sm:$0xff] %v542
        %647 = vst [vmem:[%s606] ss:$4 sm:$0xff] %v543
        %v648 = vld.sshfl [vmem:[#allocation1] sm:$0xff pattern:$0x73625140]
        %v649 = vld.sshfl [vmem:[#allocation1 + $0x20] sm:$0xff pattern:$0x73625140]
        %650 = vst [vmem:[#allocation1] ss:$4 sm:$0xff] %v470
        %651 = vst [vmem:[%s594] ss:$4 sm:$0xff] %v544
        %652 = vst [vmem:[%s596] ss:$4 sm:$0xff] %v545
        %653 = vst [vmem:[%s598] ss:$4 sm:$0xff] %v546
        %654 = vst [vmem:[%s600] ss:$4 sm:$0xff] %v471
        %655 = vst [vmem:[%s602] ss:$4 sm:$0xff] %v472
        %656 = vst [vmem:[%s604] ss:$4 sm:$0xff] %v547
        %657 = vst [vmem:[%s606] ss:$4 sm:$0xff] %v548
        %v658 = vld.sshfl [vmem:[#allocation1] sm:$0xff pattern:$0x73625140]
        %v659 = vld.sshfl [vmem:[#allocation1 + $0x20] sm:$0xff pattern:$0x73625140]
        %660 = vst [vmem:[#allocation1] ss:$4 sm:$0xff] %v549
        %661 = vst [vmem:[%s594] ss:$4 sm:$0xff] %v473
        %662 = vst [vmem:[%s596] ss:$4 sm:$0xff] %v550
        %663 = vst [vmem:[%s598] ss:$4 sm:$0xff] %v551
        %664 = vst [vmem:[%s600] ss:$4 sm:$0xff] %v552
        %665 = vst [vmem:[%s602] ss:$4 sm:$0xff] %v474
        %666 = vst [vmem:[%s604] ss:$4 sm:$0xff] %v475
        %667 = vst [vmem:[%s606] ss:$4 sm:$0xff] %v553
        %v668 = vld.sshfl [vmem:[#allocation1] sm:$0xff pattern:$0x73625140]
        %v669 = vld.sshfl [vmem:[#allocation1 + $0x20] sm:$0xff pattern:$0x73625140]
        %670 = vst [vmem:[#allocation1] ss:$4 sm:$0xff] %v554
        %671 = vst [vmem:[%s594] ss:$4 sm:$0xff] %v555
        %672 = vst [vmem:[%s596] ss:$4 sm:$0xff] %v476
        %673 = vst [vmem:[%s598] ss:$4 sm:$0xff] %v556
        %674 = vst [vmem:[%s600] ss:$4 sm:$0xff] %v557
        %675 = vst [vmem:[%s602] ss:$4 sm:$0xff] %v558
        %676 = vst [vmem:[%s604] ss:$4 sm:$0xff] %v477
        %677 = vst [vmem:[%s606] ss:$4 sm:$0xff] %v478
        %v678 = vld.sshfl [vmem:[#allocation1] sm:$0xff pattern:$0x73625140]
        %v679 = vld.sshfl [vmem:[#allocation1 + $0x20] sm:$0xff pattern:$0x73625140]
        %680 = vst [vmem:[#allocation1] ss:$4 sm:$0xff] %v559
        %681 = vst [vmem:[%s594] ss:$4 sm:$0xff] %v560
        %682 = vst [vmem:[%s596] ss:$4 sm:$0xff] %v561
        %683 = vst [vmem:[%s598] ss:$4 sm:$0xff] %v479
        %684 = vst [vmem:[%s600] ss:$4 sm:$0xff] %v562
        %685 = vst [vmem:[%s602] ss:$4 sm:$0xff] %v563
        %686 = vst [vmem:[%s604] ss:$4 sm:$0xff] %v564
        %687 = vst [vmem:[%s606] ss:$4 sm:$0xff] %v480
        %v688 = vld.sshfl [vmem:[#allocation1] sm:$0xff pattern:$0x73625140]
        %v689 = vld.sshfl [vmem:[#allocation1 + $0x20] sm:$0xff pattern:$0x73625140]
        %690 = vst [vmem:[#allocation1] ss:$4 sm:$0xff] %v481
        %691 = vst [vmem:[%s594] ss:$4 sm:$0xff] %v565
        %692 = vst [vmem:[%s596] ss:$4 sm:$0xff] %v566
        %693 = vst [vmem:[%s598] ss:$4 sm:$0xff] %v567
        %694 = vst [vmem:[%s600] ss:$4 sm:$0xff] %v482
        %695 = vst [vmem:[%s602] ss:$4 sm:$0xff] %v568
        %696 = vst [vmem:[%s604] ss:$4 sm:$0xff] %v569
        %697 = vst [vmem:[%s606] ss:$4 sm:$0xff] %v570
        %v698 = vld.sshfl [vmem:[#allocation1] sm:$0xff pattern:$0x73625140]
        %v699 = vld.sshfl [vmem:[#allocation1 + $0x20] sm:$0xff pattern:$0x73625140]
        %700 = vst [vmem:[#allocation1] ss:$4 sm:$0xff] %v483
        %701 = vst [vmem:[%s594] ss:$4 sm:$0xff] %v484
        %702 = vst [vmem:[%s596] ss:$4 sm:$0xff] %v571
        %703 = vst [vmem:[%s598] ss:$4 sm:$0xff] %v572
        %704 = vst [vmem:[%s600] ss:$4 sm:$0xff] %v573
        %705 = vst [vmem:[%s602] ss:$4 sm:$0xff] %v485
        %706 = vst [vmem:[%s604] ss:$4 sm:$0xff] %v574
        %707 = vst [vmem:[%s606] ss:$4 sm:$0xff] %v575
        %v708 = vld.sshfl [vmem:[#allocation1] sm:$0xff pattern:$0x73625140]
        %v709 = vld.sshfl [vmem:[#allocation1 + $0x20] sm:$0xff pattern:$0x73625140]
        %710 = vst [vmem:[#allocation1] ss:$4 sm:$0xff] %v576
        %711 = vst [vmem:[%s594] ss:$4 sm:$0xff] %v486
        %v712 = vld.sshfl [vmem:[#allocation1] sm:$0xff pattern:$0x73625140]
        %736 = vmatpush.msra.mxu0 %v592
        %737 = vmatpush.msra.mxu0 %v591
        %738 = vmatpush.msra.mxu0 %v590
        %739 = vmatpush.msra.mxu0 %v589
        %740 = vmatpush.msra.mxu0 %v588
        %741 = vmatpush.msra.mxu0 %v587
        %742 = vmatpush.msra.mxu0 %v586
        %743 = vmatpush.msra.mxu0 %v585
        %744 = vmatpush.msra.mxu0 %v584
        %745 = vmatpush.msra.mxu0 %v583
        %746 = vmatpush.msra.mxu0 %v582
        %747 = vmatpush.msra.mxu0 %v581
        %748 = vmatpush.msra.mxu0 %v580
        %749 = vmatpush.msra.mxu0 %v579
        %750 = vmatpush.msra.mxu0 %v578
        %751 = vmatpush.msra.mxu0 %v577
        %752 = vmatmul.f32.gmra.mxu0 %v608
        %v753 = vpop.f32.mrf.mxu0
        %v754 = vadd.f32 0.0, %v753
        %755 = vmatmul.f32.gmra.mxu0 %v609
        %v756 = vpop.f32.mrf.mxu0
        %v757 = vadd.f32 0.0, %v756
        %758 = vmatmul.f32.gmra.mxu0 %v618
        %v759 = vpop.f32.mrf.mxu0
        %v760 = vadd.f32 0.0, %v759
        %761 = vmatmul.f32.gmra.mxu0 %v619
        %v762 = vpop.f32.mrf.mxu0
        %v763 = vadd.f32 0.0, %v762
        %764 = vmatmul.f32.gmra.mxu0 %v628
        %v765 = vpop.f32.mrf.mxu0
        %v766 = vadd.f32 0.0, %v765
        %767 = vmatmul.f32.gmra.mxu0 %v629
        %v768 = vpop.f32.mrf.mxu0
        %v769 = vadd.f32 0.0, %v768
        %770 = vmatmul.f32.gmra.mxu0 %v638
        %v771 = vpop.f32.mrf.mxu0
        %v772 = vadd.f32 0.0, %v771
        %773 = vmatmul.f32.gmra.mxu0 %v639
        %v774 = vpop.f32.mrf.mxu0
        %v775 = vadd.f32 0.0, %v774
        %776 = vmatmul.f32.gmra.mxu0 %v648
        %v777 = vpop.f32.mrf.mxu0
        %v778 = vadd.f32 0.0, %v777
        %779 = vmatmul.f32.gmra.mxu0 %v649
        %v780 = vpop.f32.mrf.mxu0
        %v781 = vadd.f32 0.0, %v780
        %782 = vmatmul.f32.gmra.mxu0 %v658
        %v783 = vpop.f32.mrf.mxu0
        %v784 = vadd.f32 0.0, %v783
        %785 = vmatmul.f32.gmra.mxu0 %v659
        %v786 = vpop.f32.mrf.mxu0
        %v787 = vadd.f32 0.0, %v786
        %788 = vmatmul.f32.gmra.mxu0 %v668
        %v789 = vpop.f32.mrf.mxu0
        %v790 = vadd.f32 0.0, %v789
        %791 = vmatmul.f32.gmra.mxu0 %v669
        %v792 = vpop.f32.mrf.mxu0
        %v793 = vadd.f32 0.0, %v792
        %794 = vmatmul.f32.gmra.mxu0 %v678
        %v795 = vpop.f32.mrf.mxu0
        %v796 = vadd.f32 0.0, %v795
        %797 = vmatmul.f32.gmra.mxu0 %v679
        %v798 = vpop.f32.mrf.mxu0
        %v799 = vadd.f32 0.0, %v798
        %800 = vmatmul.f32.gmra.mxu0 %v688
        %v801 = vpop.f32.mrf.mxu0
        %v802 = vadd.f32 0.0, %v801
        %803 = vmatmul.f32.gmra.mxu0 %v689
        %v804 = vpop.f32.mrf.mxu0
        %v805 = vadd.f32 0.0, %v804
        %806 = vmatmul.f32.gmra.mxu0 %v698
        %v807 = vpop.f32.mrf.mxu0
        %v808 = vadd.f32 0.0, %v807
        %809 = vmatmul.f32.gmra.mxu0 %v699
        %v810 = vpop.f32.mrf.mxu0
        %v811 = vadd.f32 0.0, %v810
        %812 = vmatmul.f32.gmra.mxu0 %v708
        %v813 = vpop.f32.mrf.mxu0
        %v814 = vadd.f32 0.0, %v813
        %815 = vmatmul.f32.gmra.mxu0 %v709
        %v816 = vpop.f32.mrf.mxu0
        %v817 = vadd.f32 0.0, %v816
        %818 = vmatmul.f32.gmra.mxu0 %v712
        %v819 = vpop.f32.mrf.mxu0
        %v820 = vadd.f32 0.0, %v819
        %821 = vdwg.mxu0
        %v822 = vld [vmem:[%s2] sm:$0x1]
        %v824 = vperm.slane %v822, 0
        %v826 = vmul.f32 %v754, %v824
        %v827 = vmul.f32 %v757, %v824
        %v828 = vmul.f32 %v760, %v824
        %v829 = vmul.f32 %v763, %v824
        %v830 = vmul.f32 %v766, %v824
        %v831 = vmul.f32 %v769, %v824
        %v832 = vmul.f32 %v772, %v824
        %v833 = vmul.f32 %v775, %v824
        %v834 = vmul.f32 %v778, %v824
        %v835 = vmul.f32 %v781, %v824
        %v836 = vmul.f32 %v784, %v824
        %v837 = vmul.f32 %v787, %v824
        %v838 = vmul.f32 %v790, %v824
        %v839 = vmul.f32 %v793, %v824
        %v840 = vmul.f32 %v796, %v824
        %v841 = vmul.f32 %v799, %v824
        %v842 = vmul.f32 %v802, %v824
        %v843 = vmul.f32 %v805, %v824
        %v844 = vmul.f32 %v808, %v824
        %v845 = vmul.f32 %v811, %v824
        %v846 = vmul.f32 %v814, %v824
        %v847 = vmul.f32 %v817, %v824
        %v848 = vmul.f32 %v820, %v824
        %v849 = vld [vmem:[%s3] sm:$0x1]
        %v851 = vperm.slane %v849, 0
        %v853 = vadd.f32 %v826, %v851
        %v854 = vadd.f32 %v827, %v851
        %v855 = vadd.f32 %v828, %v851
        %v856 = vadd.f32 %v829, %v851
        %v857 = vadd.f32 %v830, %v851
        %v858 = vadd.f32 %v831, %v851
        %v859 = vadd.f32 %v832, %v851
        %v860 = vadd.f32 %v833, %v851
        %v861 = vadd.f32 %v834, %v851
        %v862 = vadd.f32 %v835, %v851
        %v863 = vadd.f32 %v836, %v851
        %v864 = vadd.f32 %v837, %v851
        %v865 = vadd.f32 %v838, %v851
        %v866 = vadd.f32 %v839, %v851
        %v867 = vadd.f32 %v840, %v851
        %v868 = vadd.f32 %v841, %v851
        %v869 = vadd.f32 %v842, %v851
        %v870 = vadd.f32 %v843, %v851
        %v871 = vadd.f32 %v844, %v851
        %v872 = vadd.f32 %v845, %v851
        %v873 = vadd.f32 %v846, %v851
        %v874 = vadd.f32 %v847, %v851
        %v875 = vadd.f32 %v848, %v851
        %v876 = vmax.f32 %v853, 0.0
        %v877 = vmax.f32 %v854, 0.0
        %v878 = vmax.f32 %v855, 0.0
        %v879 = vmax.f32 %v856, 0.0
        %v880 = vmax.f32 %v857, 0.0
        %v881 = vmax.f32 %v858, 0.0
        %v882 = vmax.f32 %v859, 0.0
        %v883 = vmax.f32 %v860, 0.0
        %v884 = vmax.f32 %v861, 0.0
        %v885 = vmax.f32 %v862, 0.0
        %v886 = vmax.f32 %v863, 0.0
        %v887 = vmax.f32 %v864, 0.0
        %v888 = vmax.f32 %v865, 0.0
        %v889 = vmax.f32 %v866, 0.0
        %v890 = vmax.f32 %v867, 0.0
        %v891 = vmax.f32 %v868, 0.0
        %v892 = vmax.f32 %v869, 0.0
        %v893 = vmax.f32 %v870, 0.0
        %v894 = vmax.f32 %v871, 0.0
        %v895 = vmax.f32 %v872, 0.0
        %v896 = vmax.f32 %v873, 0.0
        %v897 = vmax.f32 %v874, 0.0
        %v898 = vmax.f32 %v875, 0.0
        %v922 = vrot.slane %v876, 2
        %v923 = vrot.slane %v876, 4
        %v924 = vrot.slane %v876, 6
        %v925 = vrot.slane %v877, 2
        %v926 = vrot.slane %v877, 4
        %v927 = vrot.slane %v877, 6
        %v928 = vrot.slane %v878, 2
        %v929 = vrot.slane %v878, 4
        %v930 = vrot.slane %v878, 6
        %v931 = vrot.slane %v879, 2
        %v932 = vrot.slane %v879, 4
        %v933 = vrot.slane %v879, 6
        %v934 = vrot.slane %v880, 2
        %v935 = vrot.slane %v880, 4
        %v936 = vrot.slane %v880, 6
        %v937 = vrot.slane %v881, 2
        %v938 = vrot.slane %v881, 4
        %v939 = vrot.slane %v881, 6
        %v940 = vrot.slane %v882, 2
        %v941 = vrot.slane %v882, 4
        %v942 = vrot.slane %v882, 6
        %v943 = vrot.slane %v883, 2
        %v944 = vrot.slane %v883, 4
        %v945 = vrot.slane %v883, 6
        %v946 = vrot.slane %v884, 2
        %v947 = vrot.slane %v884, 4
        %v948 = vrot.slane %v884, 6
        %v949 = vrot.slane %v885, 2
        %v950 = vrot.slane %v885, 4
        %v951 = vrot.slane %v885, 6
        %v952 = vrot.slane %v886, 2
        %v953 = vrot.slane %v886, 4
        %v954 = vrot.slane %v886, 6
        %v955 = vrot.slane %v887, 2
        %v956 = vrot.slane %v887, 4
        %v957 = vrot.slane %v887, 6
        %v958 = vrot.slane %v888, 2
        %v959 = vrot.slane %v888, 4
        %v960 = vrot.slane %v888, 6
        %v961 = vrot.slane %v889, 2
        %v962 = vrot.slane %v889, 4
        %v963 = vrot.slane %v889, 6
        %v964 = vrot.slane %v890, 2
        %v965 = vrot.slane %v890, 4
        %v966 = vrot.slane %v890, 6
        %v967 = vrot.slane %v891, 2
        %v968 = vrot.slane %v891, 4
        %v969 = vrot.slane %v891, 6
        %v970 = vrot.slane %v892, 2
        %v971 = vrot.slane %v892, 4
        %v972 = vrot.slane %v892, 6
        %v973 = vrot.slane %v893, 2
        %v974 = vrot.slane %v893, 4
        %v975 = vrot.slane %v893, 6
        %v976 = vrot.slane %v894, 2
        %v977 = vrot.slane %v894, 4
        %v978 = vrot.slane %v894, 6
        %v979 = vrot.slane %v895, 2
        %v980 = vrot.slane %v895, 4
        %v981 = vrot.slane %v895, 6
        %v982 = vrot.slane %v896, 2
        %v983 = vrot.slane %v896, 4
        %v984 = vrot.slane %v896, 6
        %v985 = vrot.slane %v897, 2
        %v986 = vrot.slane %v897, 4
        %v987 = vrot.slane %v897, 6
        %v988 = vrot.slane %v898, 2
        %v989 = vstv %s454
        %v990 = vadd.s32 %v989, 1
        %v991 = vadd.s32 %v989, 2
        %v992 = vadd.s32 %v989, 3
        %v993 = vadd.s32 %v989, 4
        %v994 = vadd.s32 %v989, 5
        %v995 = vadd.s32 %v989, 6
        %v996 = vadd.s32 %v989, 7
        %v997 = vadd.s32 %v989, 8
        %v998 = vadd.s32 %v989, 9
        %v999 = vlaneseq
        %v1000 = vshrl.u32 %v999, 7
        %v1001 = vadd.s32 %v1000, 8
        %v1002 = vadd.s32 %v1000, 16
        %vm1003 = vcmp.ge.s32.totalorder %v989, 1
        %vm1004 = vcmp.ge.s32.totalorder %v990, 1
        %vm1005 = vcmp.ge.s32.totalorder %v991, 1
        %vm1006 = vcmp.ge.s32.totalorder %v992, 1
        %vm1007 = vcmp.ge.s32.totalorder %v993, 1
        %vm1008 = vcmp.ge.s32.totalorder %v994, 1
        %vm1009 = vcmp.ge.s32.totalorder %v995, 1
        %vm1010 = vcmp.ge.s32.totalorder %v996, 1
        %vm1011 = vcmp.ge.s32.totalorder %v997, 1
        %vm1012 = vcmp.ge.s32.totalorder %v998, 1
        %vm1013 = vcmp.le.s32.totalorder %v989, 16
        %vm1014 = vcmp.le.s32.totalorder %v990, 16
        %vm1015 = vcmp.le.s32.totalorder %v991, 16
        %vm1016 = vcmp.le.s32.totalorder %v992, 16
        %vm1017 = vcmp.le.s32.totalorder %v993, 16
        %vm1018 = vcmp.le.s32.totalorder %v994, 16
        %vm1019 = vcmp.le.s32.totalorder %v995, 16
        %vm1020 = vcmp.le.s32.totalorder %v996, 16
        %vm1021 = vcmp.le.s32.totalorder %v997, 16
        %vm1022 = vcmp.le.s32.totalorder %v998, 16
        %vm1023 = vmand %vm1003, %vm1013
        %vm1024 = vmand %vm1004, %vm1014
        %vm1025 = vmand %vm1005, %vm1015
        %vm1026 = vmand %vm1006, %vm1016
        %vm1027 = vmand %vm1007, %vm1017
        %vm1028 = vmand %vm1008, %vm1018
        %vm1029 = vmand %vm1009, %vm1019
        %vm1030 = vmand %vm1010, %vm1020
        %vm1031 = vmand %vm1011, %vm1021
        %vm1032 = vmand %vm1012, %vm1022
        %vm1033 = vcmp.ge.s32.totalorder %v1000, 1
        %vm1034 = vcmp.ge.s32.totalorder %v1001, 1
        %vm1035 = vcmp.ge.s32.totalorder %v1002, 1
        %vm1036 = vmand %vm1023, %vm1033
        %vm1037 = vmand %vm1023, %vm1034
        %vm1038 = vmand %vm1023, %vm1035
        %vm1039 = vmand %vm1024, %vm1033
        %vm1040 = vmand %vm1024, %vm1034
        %vm1041 = vmand %vm1024, %vm1035
        %vm1042 = vmand %vm1025, %vm1033
        %vm1043 = vmand %vm1025, %vm1034
        %vm1044 = vmand %vm1025, %vm1035
        %vm1045 = vmand %vm1026, %vm1033
        %vm1046 = vmand %vm1026, %vm1034
        %vm1047 = vmand %vm1026, %vm1035
        %vm1048 = vmand %vm1027, %vm1033
        %vm1049 = vmand %vm1027, %vm1034
        %vm1050 = vmand %vm1027, %vm1035
        %vm1051 = vmand %vm1028, %vm1033
        %vm1052 = vmand %vm1028, %vm1034
        %vm1053 = vmand %vm1028, %vm1035
        %vm1054 = vmand %vm1029, %vm1033
        %vm1055 = vmand %vm1029, %vm1034
        %vm1056 = vmand %vm1029, %vm1035
        %vm1057 = vmand %vm1030, %vm1033
        %vm1058 = vmand %vm1030, %vm1034
        %vm1059 = vmand %vm1030, %vm1035
        %vm1060 = vmand %vm1031, %vm1033
        %vm1061 = vmand %vm1031, %vm1034
        %vm1062 = vmand %vm1031, %vm1035
        %vm1063 = vmand %vm1032, %vm1033
        %vm1064 = vmand %vm1032, %vm1034
        %vm1065 = vmand %vm1032, %vm1035
        %vm1066 = vcmp.le.s32.totalorder %v1000, 16
        %vm1067 = vcmp.le.s32.totalorder %v1001, 16
        %vm1068 = vcmp.le.s32.totalorder %v1002, 16
        %vm1069 = vmand %vm1036, %vm1066
        %vm1070 = vmand %vm1037, %vm1067
        %vm1071 = vmand %vm1038, %vm1068
        %vm1072 = vmand %vm1039, %vm1066
        %vm1073 = vmand %vm1040, %vm1067
        %vm1074 = vmand %vm1041, %vm1068
        %vm1075 = vmand %vm1042, %vm1066
        %vm1076 = vmand %vm1043, %vm1067
        %vm1077 = vmand %vm1044, %vm1068
        %vm1078 = vmand %vm1045, %vm1066
        %vm1079 = vmand %vm1046, %vm1067
        %vm1080 = vmand %vm1047, %vm1068
        %vm1081 = vmand %vm1048, %vm1066
        %vm1082 = vmand %vm1049, %vm1067
        %vm1083 = vmand %vm1050, %vm1068
        %vm1084 = vmand %vm1051, %vm1066
        %vm1085 = vmand %vm1052, %vm1067
        %vm1086 = vmand %vm1053, %vm1068
        %vm1087 = vmand %vm1054, %vm1066
        %vm1088 = vmand %vm1055, %vm1067
        %vm1089 = vmand %vm1056, %vm1068
        %vm1090 = vmand %vm1057, %vm1066
        %vm1091 = vmand %vm1058, %vm1067
        %vm1092 = vmand %vm1059, %vm1068
        %vm1093 = vmand %vm1060, %vm1066
        %vm1094 = vmand %vm1061, %vm1067
        %vm1095 = vmand %vm1062, %vm1068
        %vm1096 = vmand %vm1063, %vm1066
        %vm1097 = vmand %vm1064, %vm1067
        %vm1098 = vmand %vm1065, %vm1068
        %1099 = vst [vmem:[#allocation1] ss:$4 sm:$0xff] %v876
        %s1100 = scalar_lea.vmem [#allocation1], 1
        %1101 = vst [vmem:[%s1100] ss:$4 sm:$0xff] %v922
        %s1102 = scalar_lea.vmem [#allocation1], 2
        %1103 = vst [vmem:[%s1102] ss:$4 sm:$0xff] %v923
        %s1104 = scalar_lea.vmem [#allocation1], 3
        %1105 = vst [vmem:[%s1104] ss:$4 sm:$0xff] %v924
        %s1106 = scalar_lea.vmem [#allocation1], 32
        %1107 = vst [vmem:[%s1106] ss:$4 sm:$0xff] %v877
        %s1108 = scalar_lea.vmem [#allocation1], 33
        %1109 = vst [vmem:[%s1108] ss:$4 sm:$0xff] %v925
        %s1110 = scalar_lea.vmem [#allocation1], 34
        %1111 = vst [vmem:[%s1110] ss:$4 sm:$0xff] %v926
        %s1112 = scalar_lea.vmem [#allocation1], 35
        %1113 = vst [vmem:[%s1112] ss:$4 sm:$0xff] %v927
        %v1114 = vld.sshfl [vmem:[#allocation1] sm:$0xff pattern:$0x73625140]
        %v1115 = vld.sshfl [vmem:[#allocation1 + $0x20] sm:$0xff pattern:$0x73625140]
        %1116 = vst [vmem:[#allocation1] ss:$4 sm:$0xff] %v878
        %v1117 = vld.sshfl [vmem:[#allocation1] sm:$0xff pattern:$0x73625140]
        %1118 = vst [vmem:[%s1106] ss:$4 sm:$0xff] %v928
        %1119 = vst [vmem:[%s1108] ss:$4 sm:$0xff] %v929
        %1120 = vst [vmem:[%s1110] ss:$4 sm:$0xff] %v930
        %1121 = vst [vmem:[%s1112] ss:$4 sm:$0xff] %v879
        %v1122 = vld.sshfl [vmem:[#allocation1 + $0x20] sm:$0xff pattern:$0x73625140]
        %1123 = vst [vmem:[#allocation1] ss:$4 sm:$0xff] %v931
        %1124 = vst [vmem:[%s1100] ss:$4 sm:$0xff] %v932
        %1125 = vst [vmem:[%s1102] ss:$4 sm:$0xff] %v933
        %1126 = vst [vmem:[%s1104] ss:$4 sm:$0xff] %v880
        %1127 = vst [vmem:[%s1106] ss:$4 sm:$0xff] %v934
        %v1128 = vld.sshfl [vmem:[#allocation1] sm:$0xff pattern:$0x73625140]
        %v1129 = vld.sshfl [vmem:[#allocation1 + $0x20] sm:$0xff pattern:$0x73625140]
        %1130 = vst [vmem:[#allocation1] ss:$4 sm:$0xff] %v935
        %1131 = vst [vmem:[%s1100] ss:$4 sm:$0xff] %v936
        %1132 = vst [vmem:[%s1102] ss:$4 sm:$0xff] %v881
        %1133 = vst [vmem:[%s1104] ss:$4 sm:$0xff] %v937
        %1134 = vst [vmem:[%s1106] ss:$4 sm:$0xff] %v938
        %1135 = vst [vmem:[%s1108] ss:$4 sm:$0xff] %v939
        %1136 = vst [vmem:[%s1110] ss:$4 sm:$0xff] %v882
        %1137 = vst [vmem:[%s1112] ss:$4 sm:$0xff] %v940
        %v1138 = vld.sshfl [vmem:[#allocation1] sm:$0xff pattern:$0x73625140]
        %v1139 = vld.sshfl [vmem:[#allocation1 + $0x20] sm:$0xff pattern:$0x73625140]
        %1140 = vst [vmem:[#allocation1] ss:$4 sm:$0xff] %v941
        %v1141 = vld.sshfl [vmem:[#allocation1] sm:$0xff pattern:$0x73625140]
        %1142 = vst [vmem:[%s1106] ss:$4 sm:$0xff] %v942
        %1143 = vst [vmem:[%s1108] ss:$4 sm:$0xff] %v883
        %1144 = vst [vmem:[%s1110] ss:$4 sm:$0xff] %v943
        %1145 = vst [vmem:[%s1112] ss:$4 sm:$0xff] %v944
        %v1146 = vld.sshfl [vmem:[#allocation1 + $0x20] sm:$0xff pattern:$0x73625140]
        %1147 = vst [vmem:[#allocation1] ss:$4 sm:$0xff] %v945
        %1148 = vst [vmem:[%s1100] ss:$4 sm:$0xff] %v884
        %1149 = vst [vmem:[%s1102] ss:$4 sm:$0xff] %v946
        %1150 = vst [vmem:[%s1104] ss:$4 sm:$0xff] %v947
        %1151 = vst [vmem:[%s1106] ss:$4 sm:$0xff] %v948
        %v1152 = vld.sshfl [vmem:[#allocation1] sm:$0xff pattern:$0x73625140]
        %v1153 = vld.sshfl [vmem:[#allocation1 + $0x20] sm:$0xff pattern:$0x73625140]
        %1154 = vst [vmem:[#allocation1] ss:$4 sm:$0xff] %v885
        %1155 = vst [vmem:[%s1100] ss:$4 sm:$0xff] %v949
        %1156 = vst [vmem:[%s1102] ss:$4 sm:$0xff] %v950
        %1157 = vst [vmem:[%s1104] ss:$4 sm:$0xff] %v951
        %1158 = vst [vmem:[%s1106] ss:$4 sm:$0xff] %v886
        %1159 = vst [vmem:[%s1108] ss:$4 sm:$0xff] %v952
        %1160 = vst [vmem:[%s1110] ss:$4 sm:$0xff] %v953
        %1161 = vst [vmem:[%s1112] ss:$4 sm:$0xff] %v954
        %v1162 = vld.sshfl [vmem:[#allocation1] sm:$0xff pattern:$0x73625140]
        %v1163 = vld.sshfl [vmem:[#allocation1 + $0x20] sm:$0xff pattern:$0x73625140]
        %1164 = vst [vmem:[#allocation1] ss:$4 sm:$0xff] %v887
        %v1165 = vld.sshfl [vmem:[#allocation1] sm:$0xff pattern:$0x73625140]
        %1166 = vst [vmem:[%s1106] ss:$4 sm:$0xff] %v955
        %1167 = vst [vmem:[%s1108] ss:$4 sm:$0xff] %v956
        %1168 = vst [vmem:[%s1110] ss:$4 sm:$0xff] %v957
        %1169 = vst [vmem:[%s1112] ss:$4 sm:$0xff] %v888
        %v1170 = vld.sshfl [vmem:[#allocation1 + $0x20] sm:$0xff pattern:$0x73625140]
        %1171 = vst [vmem:[#allocation1] ss:$4 sm:$0xff] %v958
        %1172 = vst [vmem:[%s1100] ss:$4 sm:$0xff] %v959
        %1173 = vst [vmem:[%s1102] ss:$4 sm:$0xff] %v960
        %1174 = vst [vmem:[%s1104] ss:$4 sm:$0xff] %v889
        %1175 = vst [vmem:[%s1106] ss:$4 sm:$0xff] %v961
        %v1176 = vld.sshfl [vmem:[#allocation1] sm:$0xff pattern:$0x73625140]
        %v1177 = vld.sshfl [vmem:[#allocation1 + $0x20] sm:$0xff pattern:$0x73625140]
        %1178 = vst [vmem:[#allocation1] ss:$4 sm:$0xff] %v962
        %1179 = vst [vmem:[%s1100] ss:$4 sm:$0xff] %v963
        %1180 = vst [vmem:[%s1102] ss:$4 sm:$0xff] %v890
        %1181 = vst [vmem:[%s1104] ss:$4 sm:$0xff] %v964
        %1182 = vst [vmem:[%s1106] ss:$4 sm:$0xff] %v965
        %1183 = vst [vmem:[%s1108] ss:$4 sm:$0xff] %v966
        %1184 = vst [vmem:[%s1110] ss:$4 sm:$0xff] %v891
        %1185 = vst [vmem:[%s1112] ss:$4 sm:$0xff] %v967
        %v1186 = vld.sshfl [vmem:[#allocation1] sm:$0xff pattern:$0x73625140]
        %v1187 = vld.sshfl [vmem:[#allocation1 + $0x20] sm:$0xff pattern:$0x73625140]
        %1188 = vst [vmem:[#allocation1] ss:$4 sm:$0xff] %v968
        %v1189 = vld.sshfl [vmem:[#allocation1] sm:$0xff pattern:$0x73625140]
        %1190 = vst [vmem:[%s1106] ss:$4 sm:$0xff] %v969
        %1191 = vst [vmem:[%s1108] ss:$4 sm:$0xff] %v892
        %1192 = vst [vmem:[%s1110] ss:$4 sm:$0xff] %v970
        %1193 = vst [vmem:[%s1112] ss:$4 sm:$0xff] %v971
        %v1194 = vld.sshfl [vmem:[#allocation1 + $0x20] sm:$0xff pattern:$0x73625140]
        %1195 = vst [vmem:[#allocation1] ss:$4 sm:$0xff] %v972
        %1196 = vst [vmem:[%s1100] ss:$4 sm:$0xff] %v893
        %1197 = vst [vmem:[%s1102] ss:$4 sm:$0xff] %v973
        %1198 = vst [vmem:[%s1104] ss:$4 sm:$0xff] %v974
        %1199 = vst [vmem:[%s1106] ss:$4 sm:$0xff] %v975
        %v1200 = vld.sshfl [vmem:[#allocation1] sm:$0xff pattern:$0x73625140]
        %v1201 = vld.sshfl [vmem:[#allocation1 + $0x20] sm:$0xff pattern:$0x73625140]
        %1202 = vst [vmem:[#allocation1] ss:$4 sm:$0xff] %v894
        %1203 = vst [vmem:[%s1100] ss:$4 sm:$0xff] %v976
        %1204 = vst [vmem:[%s1102] ss:$4 sm:$0xff] %v977
        %1205 = vst [vmem:[%s1104] ss:$4 sm:$0xff] %v978
        %1206 = vst [vmem:[%s1106] ss:$4 sm:$0xff] %v895
        %1207 = vst [vmem:[%s1108] ss:$4 sm:$0xff] %v979
        %1208 = vst [vmem:[%s1110] ss:$4 sm:$0xff] %v980
        %1209 = vst [vmem:[%s1112] ss:$4 sm:$0xff] %v981
        %v1210 = vld.sshfl [vmem:[#allocation1] sm:$0xff pattern:$0x73625140]
        %v1211 = vld.sshfl [vmem:[#allocation1 + $0x20] sm:$0xff pattern:$0x73625140]
        %1212 = vst [vmem:[#allocation1] ss:$4 sm:$0xff] %v896
        %v1213 = vld.sshfl [vmem:[#allocation1] sm:$0xff pattern:$0x73625140]
        %1214 = vst [vmem:[%s1106] ss:$4 sm:$0xff] %v982
        %1215 = vst [vmem:[%s1108] ss:$4 sm:$0xff] %v983
        %1216 = vst [vmem:[%s1110] ss:$4 sm:$0xff] %v984
        %1217 = vst [vmem:[%s1112] ss:$4 sm:$0xff] %v897
        %v1218 = vld.sshfl [vmem:[#allocation1 + $0x20] sm:$0xff pattern:$0x73625140]
        %1219 = vst [vmem:[#allocation1] ss:$4 sm:$0xff] %v985
        %1220 = vst [vmem:[%s1100] ss:$4 sm:$0xff] %v986
        %1221 = vst [vmem:[%s1102] ss:$4 sm:$0xff] %v987
        %1222 = vst [vmem:[%s1104] ss:$4 sm:$0xff] %v898
        %1223 = vst [vmem:[%s1106] ss:$4 sm:$0xff] %v988
        %v1224 = vld.sshfl [vmem:[#allocation1] sm:$0xff pattern:$0x73625140]
        %v1225 = vld.sshfl [vmem:[#allocation1 + $0x20] sm:$0xff pattern:$0x73625140]
        %v1256 = vsel %vm1069, %v1114, 0.0
        %v1257 = vsel %vm1070, %v1115, 0.0
        %v1258 = vsel %vm1071, %v1117, 0.0
        %v1259 = vsel %vm1072, %v1122, 0.0
        %v1260 = vsel %vm1073, %v1128, 0.0
        %v1261 = vsel %vm1074, %v1129, 0.0
        %v1262 = vsel %vm1075, %v1138, 0.0
        %v1263 = vsel %vm1076, %v1139, 0.0
        %v1264 = vsel %vm1077, %v1141, 0.0
        %v1265 = vsel %vm1078, %v1146, 0.0
        %v1266 = vsel %vm1079, %v1152, 0.0
        %v1267 = vsel %vm1080, %v1153, 0.0
        %v1268 = vsel %vm1081, %v1162, 0.0
        %v1269 = vsel %vm1082, %v1163, 0.0
        %v1270 = vsel %vm1083, %v1165, 0.0
        %v1271 = vsel %vm1084, %v1170, 0.0
        %v1272 = vsel %vm1085, %v1176, 0.0
        %v1273 = vsel %vm1086, %v1177, 0.0
        %v1274 = vsel %vm1087, %v1186, 0.0
        %v1275 = vsel %vm1088, %v1187, 0.0
        %v1276 = vsel %vm1089, %v1189, 0.0
        %v1277 = vsel %vm1090, %v1194, 0.0
        %v1278 = vsel %vm1091, %v1200, 0.0
        %v1279 = vsel %vm1092, %v1201, 0.0
        %v1280 = vsel %vm1093, %v1210, 0.0
        %v1281 = vsel %vm1094, %v1211, 0.0
        %v1282 = vsel %vm1095, %v1213, 0.0
        %v1283 = vsel %vm1096, %v1218, 0.0
        %v1284 = vsel %vm1097, %v1224, 0.0
        %v1285 = vsel %vm1098, %v1225, 0.0
        %v1286 = vld [vmem:[%s4] sm:$0xff]
        %v1287 = vld [vmem:[%s4 + $0x8] sm:$0x1]
        %v1288 = vperm.slane %v1286, 0
        %v1289 = vmul.f32 %v1256, %v1288
        %v1290 = vmul.f32 %v1257, %v1288
        %v1291 = vmul.f32 %v1259, %v1288
        %v1292 = vmul.f32 %v1260, %v1288
        %v1293 = vmul.f32 %v1262, %v1288
        %v1294 = vmul.f32 %v1263, %v1288
        %v1295 = vmul.f32 %v1265, %v1288
        %v1296 = vmul.f32 %v1266, %v1288
        %v1297 = vmul.f32 %v1268, %v1288
        %v1298 = vmul.f32 %v1269, %v1288
        %v1299 = vmul.f32 %v1271, %v1288
        %v1300 = vmul.f32 %v1272, %v1288
        %v1301 = vmul.f32 %v1274, %v1288
        %v1302 = vmul.f32 %v1275, %v1288
        %v1303 = vmul.f32 %v1277, %v1288
        %v1304 = vmul.f32 %v1278, %v1288
        %v1305 = vadd.f32 %v1289, 0.0
        %v1306 = vadd.f32 %v1290, 0.0
        %v1307 = vadd.f32 %v1291, 0.0
        %v1308 = vadd.f32 %v1292, 0.0
        %v1309 = vadd.f32 %v1293, 0.0
        %v1310 = vadd.f32 %v1294, 0.0
        %v1311 = vadd.f32 %v1295, 0.0
        %v1312 = vadd.f32 %v1296, 0.0
        %v1313 = vadd.f32 %v1297, 0.0
        %v1314 = vadd.f32 %v1298, 0.0
        %v1315 = vadd.f32 %v1299, 0.0
        %v1316 = vadd.f32 %v1300, 0.0
        %v1317 = vadd.f32 %v1301, 0.0
        %v1318 = vadd.f32 %v1302, 0.0
        %v1319 = vadd.f32 %v1303, 0.0
        %v1320 = vadd.f32 %v1304, 0.0
        %v1321 = vperm.slane %v1286, 1
        %v1322 = vmul.f32 %v1256, %v1321
        %v1323 = vmul.f32 %v1257, %v1321
        %v1324 = vmul.f32 %v1258, %v1321
        %v1325 = vmul.f32 %v1259, %v1321
        %v1326 = vmul.f32 %v1260, %v1321
        %v1327 = vmul.f32 %v1261, %v1321
        %v1328 = vmul.f32 %v1262, %v1321
        %v1329 = vmul.f32 %v1263, %v1321
        %v1330 = vmul.f32 %v1264, %v1321
        %v1331 = vmul.f32 %v1265, %v1321
        %v1332 = vmul.f32 %v1266, %v1321
        %v1333 = vmul.f32 %v1267, %v1321
        %v1334 = vmul.f32 %v1268, %v1321
        %v1335 = vmul.f32 %v1269, %v1321
        %v1336 = vmul.f32 %v1270, %v1321
        %v1337 = vmul.f32 %v1271, %v1321
        %v1338 = vmul.f32 %v1272, %v1321
        %v1339 = vmul.f32 %v1273, %v1321
        %v1340 = vmul.f32 %v1274, %v1321
        %v1341 = vmul.f32 %v1275, %v1321
        %v1342 = vmul.f32 %v1276, %v1321
        %v1343 = vmul.f32 %v1277, %v1321
        %v1344 = vmul.f32 %v1278, %v1321
        %v1345 = vmul.f32 %v1279, %v1321
        %vm1370 = vcmask 1046528
        %v1371 = vrot.slane %v1322, 1
        %v1372 = vrot.slane %v1323, 1
        %v1373 = vsel %vm1370, %v1371, %v1372
        %v1374 = vrot.slane %v1324, 1
        %v1375 = vsel %vm1370, %v1372, %v1374
        %v1376 = vrot.slane %v1325, 1
        %v1377 = vrot.slane %v1326, 1
        %v1378 = vsel %vm1370, %v1376, %v1377
        %v1379 = vrot.slane %v1327, 1
        %v1380 = vsel %vm1370, %v1377, %v1379
        %v1381 = vrot.slane %v1328, 1
        %v1382 = vrot.slane %v1329, 1
        %v1383 = vsel %vm1370, %v1381, %v1382
        %v1384 = vrot.slane %v1330, 1
        %v1385 = vsel %vm1370, %v1382, %v1384
        %v1386 = vrot.slane %v1331, 1
        %v1387 = vrot.slane %v1332, 1
        %v1388 = vsel %vm1370, %v1386, %v1387
        %v1389 = vrot.slane %v1333, 1
        %v1390 = vsel %vm1370, %v1387, %v1389
        %v1391 = vrot.slane %v1334, 1
        %v1392 = vrot.slane %v1335, 1
        %v1393 = vsel %vm1370, %v1391, %v1392
        %v1394 = vrot.slane %v1336, 1
        %v1395 = vsel %vm1370, %v1392, %v1394
        %v1396 = vrot.slane %v1337, 1
        %v1397 = vrot.slane %v1338, 1
        %v1398 = vsel %vm1370, %v1396, %v1397
        %v1399 = vrot.slane %v1339, 1
        %v1400 = vsel %vm1370, %v1397, %v1399
        %v1401 = vrot.slane %v1340, 1
        %v1402 = vrot.slane %v1341, 1
        %v1403 = vsel %vm1370, %v1401, %v1402
        %v1404 = vrot.slane %v1342, 1
        %v1405 = vsel %vm1370, %v1402, %v1404
        %v1406 = vrot.slane %v1343, 1
        %v1407 = vrot.slane %v1344, 1
        %v1408 = vsel %vm1370, %v1406, %v1407
        %v1409 = vrot.slane %v1345, 1
        %v1410 = vsel %vm1370, %v1407, %v1409
        %v1427 = vadd.f32 %v1305, %v1373
        %v1428 = vadd.f32 %v1306, %v1375
        %v1429 = vadd.f32 %v1307, %v1378
        %v1430 = vadd.f32 %v1308, %v1380
        %v1431 = vadd.f32 %v1309, %v1383
        %v1432 = vadd.f32 %v1310, %v1385
        %v1433 = vadd.f32 %v1311, %v1388
        %v1434 = vadd.f32 %v1312, %v1390
        %v1435 = vadd.f32 %v1313, %v1393
        %v1436 = vadd.f32 %v1314, %v1395
        %v1437 = vadd.f32 %v1315, %v1398
        %v1438 = vadd.f32 %v1316, %v1400
        %v1439 = vadd.f32 %v1317, %v1403
        %v1440 = vadd.f32 %v1318, %v1405
        %v1441 = vadd.f32 %v1319, %v1408
        %v1442 = vadd.f32 %v1320, %v1410
        %v1443 = vperm.slane %v1286, 2
        %v1444 = vmul.f32 %v1256, %v1443
        %v1445 = vmul.f32 %v1257, %v1443
        %v1446 = vmul.f32 %v1258, %v1443
        %v1447 = vmul.f32 %v1259, %v1443
        %v1448 = vmul.f32 %v1260, %v1443
        %v1449 = vmul.f32 %v1261, %v1443
        %v1450 = vmul.f32 %v1262, %v1443
        %v1451 = vmul.f32 %v1263, %v1443
        %v1452 = vmul.f32 %v1264, %v1443
        %v1453 = vmul.f32 %v1265, %v1443
        %v1454 = vmul.f32 %v1266, %v1443
        %v1455 = vmul.f32 %v1267, %v1443
        %v1456 = vmul.f32 %v1268, %v1443
        %v1457 = vmul.f32 %v1269, %v1443
        %v1458 = vmul.f32 %v1270, %v1443
        %v1459 = vmul.f32 %v1271, %v1443
        %v1460 = vmul.f32 %v1272, %v1443
        %v1461 = vmul.f32 %v1273, %v1443
        %v1462 = vmul.f32 %v1274, %v1443
        %v1463 = vmul.f32 %v1275, %v1443
        %v1464 = vmul.f32 %v1276, %v1443
        %v1465 = vmul.f32 %v1277, %v1443
        %v1466 = vmul.f32 %v1278, %v1443
        %v1467 = vmul.f32 %v1279, %v1443
        %vm1492 = vcmask 1045504
        %v1493 = vrot.slane %v1444, 2
        %v1494 = vrot.slane %v1445, 2
        %v1495 = vsel %vm1492, %v1493, %v1494
        %v1496 = vrot.slane %v1446, 2
        %v1497 = vsel %vm1492, %v1494, %v1496
        %v1498 = vrot.slane %v1447, 2
        %v1499 = vrot.slane %v1448, 2
        %v1500 = vsel %vm1492, %v1498, %v1499
        %v1501 = vrot.slane %v1449, 2
        %v1502 = vsel %vm1492, %v1499, %v1501
        %v1503 = vrot.slane %v1450, 2
        %v1504 = vrot.slane %v1451, 2
        %v1505 = vsel %vm1492, %v1503, %v1504
        %v1506 = vrot.slane %v1452, 2
        %v1507 = vsel %vm1492, %v1504, %v1506
        %v1508 = vrot.slane %v1453, 2
        %v1509 = vrot.slane %v1454, 2
        %v1510 = vsel %vm1492, %v1508, %v1509
        %v1511 = vrot.slane %v1455, 2
        %v1512 = vsel %vm1492, %v1509, %v1511
        %v1513 = vrot.slane %v1456, 2
        %v1514 = vrot.slane %v1457, 2
        %v1515 = vsel %vm1492, %v1513, %v1514
        %v1516 = vrot.slane %v1458, 2
        %v1517 = vsel %vm1492, %v1514, %v1516
        %v1518 = vrot.slane %v1459, 2
        %v1519 = vrot.slane %v1460, 2
        %v1520 = vsel %vm1492, %v1518, %v1519
        %v1521 = vrot.slane %v1461, 2
        %v1522 = vsel %vm1492, %v1519, %v1521
        %v1523 = vrot.slane %v1462, 2
        %v1524 = vrot.slane %v1463, 2
        %v1525 = vsel %vm1492, %v1523, %v1524
        %v1526 = vrot.slane %v1464, 2
        %v1527 = vsel %vm1492, %v1524, %v1526
        %v1528 = vrot.slane %v1465, 2
        %v1529 = vrot.slane %v1466, 2
        %v1530 = vsel %vm1492, %v1528, %v1529
        %v1531 = vrot.slane %v1467, 2
        %v1532 = vsel %vm1492, %v1529, %v1531
        %v1549 = vadd.f32 %v1427, %v1495
        %v1550 = vadd.f32 %v1428, %v1497
        %v1551 = vadd.f32 %v1429, %v1500
        %v1552 = vadd.f32 %v1430, %v1502
        %v1553 = vadd.f32 %v1431, %v1505
        %v1554 = vadd.f32 %v1432, %v1507
        %v1555 = vadd.f32 %v1433, %v1510
        %v1556 = vadd.f32 %v1434, %v1512
        %v1557 = vadd.f32 %v1435, %v1515
        %v1558 = vadd.f32 %v1436, %v1517
        %v1559 = vadd.f32 %v1437, %v1520
        %v1560 = vadd.f32 %v1438, %v1522
        %v1561 = vadd.f32 %v1439, %v1525
        %v1562 = vadd.f32 %v1440, %v1527
        %v1563 = vadd.f32 %v1441, %v1530
        %v1564 = vadd.f32 %v1442, %v1532
        %v1565 = vperm.slane %v1286, 3
        %v1566 = vmul.f32 %v1259, %v1565
        %v1567 = vmul.f32 %v1260, %v1565
        %v1568 = vmul.f32 %v1262, %v1565
        %v1569 = vmul.f32 %v1263, %v1565
        %v1570 = vmul.f32 %v1265, %v1565
        %v1571 = vmul.f32 %v1266, %v1565
        %v1572 = vmul.f32 %v1268, %v1565
        %v1573 = vmul.f32 %v1269, %v1565
        %v1574 = vmul.f32 %v1271, %v1565
        %v1575 = vmul.f32 %v1272, %v1565
        %v1576 = vmul.f32 %v1274, %v1565
        %v1577 = vmul.f32 %v1275, %v1565
        %v1578 = vmul.f32 %v1277, %v1565
        %v1579 = vmul.f32 %v1278, %v1565
        %v1580 = vmul.f32 %v1280, %v1565
        %v1581 = vmul.f32 %v1281, %v1565
        %v1582 = vadd.f32 %v1549, %v1566
        %v1583 = vadd.f32 %v1550, %v1567
        %v1584 = vadd.f32 %v1551, %v1568
        %v1585 = vadd.f32 %v1552, %v1569
        %v1586 = vadd.f32 %v1553, %v1570
        %v1587 = vadd.f32 %v1554, %v1571
        %v1588 = vadd.f32 %v1555, %v1572
        %v1589 = vadd.f32 %v1556, %v1573
        %v1590 = vadd.f32 %v1557, %v1574
        %v1591 = vadd.f32 %v1558, %v1575
        %v1592 = vadd.f32 %v1559, %v1576
        %v1593 = vadd.f32 %v1560, %v1577
        %v1594 = vadd.f32 %v1561, %v1578
        %v1595 = vadd.f32 %v1562, %v1579
        %v1596 = vadd.f32 %v1563, %v1580
        %v1597 = vadd.f32 %v1564, %v1581
        %v1598 = vperm.slane %v1286, 4
        %v1599 = vmul.f32 %v1259, %v1598
        %v1600 = vmul.f32 %v1260, %v1598
        %v1601 = vmul.f32 %v1261, %v1598
        %v1602 = vmul.f32 %v1262, %v1598
        %v1603 = vmul.f32 %v1263, %v1598
        %v1604 = vmul.f32 %v1264, %v1598
        %v1605 = vmul.f32 %v1265, %v1598
        %v1606 = vmul.f32 %v1266, %v1598
        %v1607 = vmul.f32 %v1267, %v1598
        %v1608 = vmul.f32 %v1268, %v1598
        %v1609 = vmul.f32 %v1269, %v1598
        %v1610 = vmul.f32 %v1270, %v1598
        %v1611 = vmul.f32 %v1271, %v1598
        %v1612 = vmul.f32 %v1272, %v1598
        %v1613 = vmul.f32 %v1273, %v1598
        %v1614 = vmul.f32 %v1274, %v1598
        %v1615 = vmul.f32 %v1275, %v1598
        %v1616 = vmul.f32 %v1276, %v1598
        %v1617 = vmul.f32 %v1277, %v1598
        %v1618 = vmul.f32 %v1278, %v1598
        %v1619 = vmul.f32 %v1279, %v1598
        %v1620 = vmul.f32 %v1280, %v1598
        %v1621 = vmul.f32 %v1281, %v1598
        %v1622 = vmul.f32 %v1282, %v1598
        %v1647 = vrot.slane %v1599, 1
        %v1648 = vrot.slane %v1600, 1
        %v1649 = vsel %vm1370, %v1647, %v1648
        %v1650 = vrot.slane %v1601, 1
        %v1651 = vsel %vm1370, %v1648, %v1650
        %v1652 = vrot.slane %v1602, 1
        %v1653 = vrot.slane %v1603, 1
        %v1654 = vsel %vm1370, %v1652, %v1653
        %v1655 = vrot.slane %v1604, 1
        %v1656 = vsel %vm1370, %v1653, %v1655
        %v1657 = vrot.slane %v1605, 1
        %v1658 = vrot.slane %v1606, 1
        %v1659 = vsel %vm1370, %v1657, %v1658
        %v1660 = vrot.slane %v1607, 1
        %v1661 = vsel %vm1370, %v1658, %v1660
        %v1662 = vrot.slane %v1608, 1
        %v1663 = vrot.slane %v1609, 1
        %v1664 = vsel %vm1370, %v1662, %v1663
        %v1665 = vrot.slane %v1610, 1
        %v1666 = vsel %vm1370, %v1663, %v1665
        %v1667 = vrot.slane %v1611, 1
        %v1668 = vrot.slane %v1612, 1
        %v1669 = vsel %vm1370, %v1667, %v1668
        %v1670 = vrot.slane %v1613, 1
        %v1671 = vsel %vm1370, %v1668, %v1670
        %v1672 = vrot.slane %v1614, 1
        %v1673 = vrot.slane %v1615, 1
        %v1674 = vsel %vm1370, %v1672, %v1673
        %v1675 = vrot.slane %v1616, 1
        %v1676 = vsel %vm1370, %v1673, %v1675
        %v1677 = vrot.slane %v1617, 1
        %v1678 = vrot.slane %v1618, 1
        %v1679 = vsel %vm1370, %v1677, %v1678
        %v1680 = vrot.slane %v1619, 1
        %v1681 = vsel %vm1370, %v1678, %v1680
        %v1682 = vrot.slane %v1620, 1
        %v1683 = vrot.slane %v1621, 1
        %v1684 = vsel %vm1370, %v1682, %v1683
        %v1685 = vrot.slane %v1622, 1
        %v1686 = vsel %vm1370, %v1683, %v1685
        %v1703 = vadd.f32 %v1582, %v1649
        %v1704 = vadd.f32 %v1583, %v1651
        %v1705 = vadd.f32 %v1584, %v1654
        %v1706 = vadd.f32 %v1585, %v1656
        %v1707 = vadd.f32 %v1586, %v1659
        %v1708 = vadd.f32 %v1587, %v1661
        %v1709 = vadd.f32 %v1588, %v1664
        %v1710 = vadd.f32 %v1589, %v1666
        %v1711 = vadd.f32 %v1590, %v1669
        %v1712 = vadd.f32 %v1591, %v1671
        %v1713 = vadd.f32 %v1592, %v1674
        %v1714 = vadd.f32 %v1593, %v1676
        %v1715 = vadd.f32 %v1594, %v1679
        %v1716 = vadd.f32 %v1595, %v1681
        %v1717 = vadd.f32 %v1596, %v1684
        %v1718 = vadd.f32 %v1597, %v1686
        %v1719 = vperm.slane %v1286, 5
        %v1720 = vmul.f32 %v1259, %v1719
        %v1721 = vmul.f32 %v1260, %v1719
        %v1722 = vmul.f32 %v1261, %v1719
        %v1723 = vmul.f32 %v1262, %v1719
        %v1724 = vmul.f32 %v1263, %v1719
        %v1725 = vmul.f32 %v1264, %v1719
        %v1726 = vmul.f32 %v1265, %v1719
        %v1727 = vmul.f32 %v1266, %v1719
        %v1728 = vmul.f32 %v1267, %v1719
        %v1729 = vmul.f32 %v1268, %v1719
        %v1730 = vmul.f32 %v1269, %v1719
        %v1731 = vmul.f32 %v1270, %v1719
        %v1732 = vmul.f32 %v1271, %v1719
        %v1733 = vmul.f32 %v1272, %v1719
        %v1734 = vmul.f32 %v1273, %v1719
        %v1735 = vmul.f32 %v1274, %v1719
        %v1736 = vmul.f32 %v1275, %v1719
        %v1737 = vmul.f32 %v1276, %v1719
        %v1738 = vmul.f32 %v1277, %v1719
        %v1739 = vmul.f32 %v1278, %v1719
        %v1740 = vmul.f32 %v1279, %v1719
        %v1741 = vmul.f32 %v1280, %v1719
        %v1742 = vmul.f32 %v1281, %v1719
        %v1743 = vmul.f32 %v1282, %v1719
        %v1768 = vrot.slane %v1720, 2
        %v1769 = vrot.slane %v1721, 2
        %v1770 = vsel %vm1492, %v1768, %v1769
        %v1771 = vrot.slane %v1722, 2
        %v1772 = vsel %vm1492, %v1769, %v1771
        %v1773 = vrot.slane %v1723, 2
        %v1774 = vrot.slane %v1724, 2
        %v1775 = vsel %vm1492, %v1773, %v1774
        %v1776 = vrot.slane %v1725, 2
        %v1777 = vsel %vm1492, %v1774, %v1776
        %v1778 = vrot.slane %v1726, 2
        %v1779 = vrot.slane %v1727, 2
        %v1780 = vsel %vm1492, %v1778, %v1779
        %v1781 = vrot.slane %v1728, 2
        %v1782 = vsel %vm1492, %v1779, %v1781
        %v1783 = vrot.slane %v1729, 2
        %v1784 = vrot.slane %v1730, 2
        %v1785 = vsel %vm1492, %v1783, %v1784
        %v1786 = vrot.slane %v1731, 2
        %v1787 = vsel %vm1492, %v1784, %v1786
        %v1788 = vrot.slane %v1732, 2
        %v1789 = vrot.slane %v1733, 2
        %v1790 = vsel %vm1492, %v1788, %v1789
        %v1791 = vrot.slane %v1734, 2
        %v1792 = vsel %vm1492, %v1789, %v1791
        %v1793 = vrot.slane %v1735, 2
        %v1794 = vrot.slane %v1736, 2
        %v1795 = vsel %vm1492, %v1793, %v1794
        %v1796 = vrot.slane %v1737, 2
        %v1797 = vsel %vm1492, %v1794, %v1796
        %v1798 = vrot.slane %v1738, 2
        %v1799 = vrot.slane %v1739, 2
        %v1800 = vsel %vm1492, %v1798, %v1799
        %v1801 = vrot.slane %v1740, 2
        %v1802 = vsel %vm1492, %v1799, %v1801
        %v1803 = vrot.slane %v1741, 2
        %v1804 = vrot.slane %v1742, 2
        %v1805 = vsel %vm1492, %v1803, %v1804
        %v1806 = vrot.slane %v1743, 2
        %v1807 = vsel %vm1492, %v1804, %v1806
        %v1824 = vadd.f32 %v1703, %v1770
        %v1825 = vadd.f32 %v1704, %v1772
        %v1826 = vadd.f32 %v1705, %v1775
        %v1827 = vadd.f32 %v1706, %v1777
        %v1828 = vadd.f32 %v1707, %v1780
        %v1829 = vadd.f32 %v1708, %v1782
        %v1830 = vadd.f32 %v1709, %v1785
        %v1831 = vadd.f32 %v1710, %v1787
        %v1832 = vadd.f32 %v1711, %v1790
        %v1833 = vadd.f32 %v1712, %v1792
        %v1834 = vadd.f32 %v1713, %v1795
        %v1835 = vadd.f32 %v1714, %v1797
        %v1836 = vadd.f32 %v1715, %v1800
        %v1837 = vadd.f32 %v1716, %v1802
        %v1838 = vadd.f32 %v1717, %v1805
        %v1839 = vadd.f32 %v1718, %v1807
        %v1840 = vperm.slane %v1286, 6
        %v1841 = vmul.f32 %v1262, %v1840
        %v1842 = vmul.f32 %v1263, %v1840
        %v1843 = vmul.f32 %v1265, %v1840
        %v1844 = vmul.f32 %v1266, %v1840
        %v1845 = vmul.f32 %v1268, %v1840
        %v1846 = vmul.f32 %v1269, %v1840
        %v1847 = vmul.f32 %v1271, %v1840
        %v1848 = vmul.f32 %v1272, %v1840
        %v1849 = vmul.f32 %v1274, %v1840
        %v1850 = vmul.f32 %v1275, %v1840
        %v1851 = vmul.f32 %v1277, %v1840
        %v1852 = vmul.f32 %v1278, %v1840
        %v1853 = vmul.f32 %v1280, %v1840
        %v1854 = vmul.f32 %v1281, %v1840
        %v1855 = vmul.f32 %v1283, %v1840
        %v1856 = vmul.f32 %v1284, %v1840
        %v1857 = vadd.f32 %v1824, %v1841
        %v1858 = vadd.f32 %v1825, %v1842
        %v1859 = vadd.f32 %v1826, %v1843
        %v1860 = vadd.f32 %v1827, %v1844
        %v1861 = vadd.f32 %v1828, %v1845
        %v1862 = vadd.f32 %v1829, %v1846
        %v1863 = vadd.f32 %v1830, %v1847
        %v1864 = vadd.f32 %v1831, %v1848
        %v1865 = vadd.f32 %v1832, %v1849
        %v1866 = vadd.f32 %v1833, %v1850
        %v1867 = vadd.f32 %v1834, %v1851
        %v1868 = vadd.f32 %v1835, %v1852
        %v1869 = vadd.f32 %v1836, %v1853
        %v1870 = vadd.f32 %v1837, %v1854
        %v1871 = vadd.f32 %v1838, %v1855
        %v1872 = vadd.f32 %v1839, %v1856
        %v1873 = vperm.slane %v1286, 7
        %v1874 = vmul.f32 %v1262, %v1873
        %v1875 = vmul.f32 %v1263, %v1873
        %v1876 = vmul.f32 %v1264, %v1873
        %v1877 = vmul.f32 %v1265, %v1873
        %v1878 = vmul.f32 %v1266, %v1873
        %v1879 = vmul.f32 %v1267, %v1873
        %v1880 = vmul.f32 %v1268, %v1873
        %v1881 = vmul.f32 %v1269, %v1873
        %v1882 = vmul.f32 %v1270, %v1873
        %v1883 = vmul.f32 %v1271, %v1873
        %v1884 = vmul.f32 %v1272, %v1873
        %v1885 = vmul.f32 %v1273, %v1873
        %v1886 = vmul.f32 %v1274, %v1873
        %v1887 = vmul.f32 %v1275, %v1873
        %v1888 = vmul.f32 %v1276, %v1873
        %v1889 = vmul.f32 %v1277, %v1873
        %v1890 = vmul.f32 %v1278, %v1873
        %v1891 = vmul.f32 %v1279, %v1873
        %v1892 = vmul.f32 %v1280, %v1873
        %v1893 = vmul.f32 %v1281, %v1873
        %v1894 = vmul.f32 %v1282, %v1873
        %v1895 = vmul.f32 %v1283, %v1873
        %v1896 = vmul.f32 %v1284, %v1873
        %v1897 = vmul.f32 %v1285, %v1873
        %v1922 = vrot.slane %v1874, 1
        %v1923 = vrot.slane %v1875, 1
        %v1924 = vsel %vm1370, %v1922, %v1923
        %v1925 = vrot.slane %v1876, 1
        %v1926 = vsel %vm1370, %v1923, %v1925
        %v1927 = vrot.slane %v1877, 1
        %v1928 = vrot.slane %v1878, 1
        %v1929 = vsel %vm1370, %v1927, %v1928
        %v1930 = vrot.slane %v1879, 1
        %v1931 = vsel %vm1370, %v1928, %v1930
        %v1932 = vrot.slane %v1880, 1
        %v1933 = vrot.slane %v1881, 1
        %v1934 = vsel %vm1370, %v1932, %v1933
        %v1935 = vrot.slane %v1882, 1
        %v1936 = vsel %vm1370, %v1933, %v1935
        %v1937 = vrot.slane %v1883, 1
        %v1938 = vrot.slane %v1884, 1
        %v1939 = vsel %vm1370, %v1937, %v1938
        %v1940 = vrot.slane %v1885, 1
        %v1941 = vsel %vm1370, %v1938, %v1940
        %v1942 = vrot.slane %v1886, 1
        %v1943 = vrot.slane %v1887, 1
        %v1944 = vsel %vm1370, %v1942, %v1943
        %v1945 = vrot.slane %v1888, 1
        %v1946 = vsel %vm1370, %v1943, %v1945
        %v1947 = vrot.slane %v1889, 1
        %v1948 = vrot.slane %v1890, 1
        %v1949 = vsel %vm1370, %v1947, %v1948
        %v1950 = vrot.slane %v1891, 1
        %v1951 = vsel %vm1370, %v1948, %v1950
        %v1952 = vrot.slane %v1892, 1
        %v1953 = vrot.slane %v1893, 1
        %v1954 = vsel %vm1370, %v1952, %v1953
        %v1955 = vrot.slane %v1894, 1
        %v1956 = vsel %vm1370, %v1953, %v1955
        %v1957 = vrot.slane %v1895, 1
        %v1958 = vrot.slane %v1896, 1
        %v1959 = vsel %vm1370, %v1957, %v1958
        %v1960 = vrot.slane %v1897, 1
        %v1961 = vsel %vm1370, %v1958, %v1960
        %v1978 = vadd.f32 %v1857, %v1924
        %v1979 = vadd.f32 %v1858, %v1926
        %v1980 = vadd.f32 %v1859, %v1929
        %v1981 = vadd.f32 %v1860, %v1931
        %v1982 = vadd.f32 %v1861, %v1934
        %v1983 = vadd.f32 %v1862, %v1936
        %v1984 = vadd.f32 %v1863, %v1939
        %v1985 = vadd.f32 %v1864, %v1941
        %v1986 = vadd.f32 %v1865, %v1944
        %v1987 = vadd.f32 %v1866, %v1946
        %v1988 = vadd.f32 %v1867, %v1949
        %v1989 = vadd.f32 %v1868, %v1951
        %v1990 = vadd.f32 %v1869, %v1954
        %v1991 = vadd.f32 %v1870, %v1956
        %v1992 = vadd.f32 %v1871, %v1959
        %v1993 = vadd.f32 %v1872, %v1961
        %v1994 = vperm.slane %v1287, 0
        %v1995 = vmul.f32 %v1262, %v1994
        %v1996 = vmul.f32 %v1263, %v1994
        %v1997 = vmul.f32 %v1264, %v1994
        %v1998 = vmul.f32 %v1265, %v1994
        %v1999 = vmul.f32 %v1266, %v1994
        %v2000 = vmul.f32 %v1267, %v1994
        %v2001 = vmul.f32 %v1268, %v1994
        %v2002 = vmul.f32 %v1269, %v1994
        %v2003 = vmul.f32 %v1270, %v1994
        %v2004 = vmul.f32 %v1271, %v1994
        %v2005 = vmul.f32 %v1272, %v1994
        %v2006 = vmul.f32 %v1273, %v1994
        %v2007 = vmul.f32 %v1274, %v1994
        %v2008 = vmul.f32 %v1275, %v1994
        %v2009 = vmul.f32 %v1276, %v1994
        %v2010 = vmul.f32 %v1277, %v1994
        %v2011 = vmul.f32 %v1278, %v1994
        %v2012 = vmul.f32 %v1279, %v1994
        %v2013 = vmul.f32 %v1280, %v1994
        %v2014 = vmul.f32 %v1281, %v1994
        %v2015 = vmul.f32 %v1282, %v1994
        %v2016 = vmul.f32 %v1283, %v1994
        %v2017 = vmul.f32 %v1284, %v1994
        %v2018 = vmul.f32 %v1285, %v1994
        %v2043 = vrot.slane %v1995, 2
        %v2044 = vrot.slane %v1996, 2
        %v2045 = vsel %vm1492, %v2043, %v2044
        %v2046 = vrot.slane %v1997, 2
        %v2047 = vsel %vm1492, %v2044, %v2046
        %v2048 = vrot.slane %v1998, 2
        %v2049 = vrot.slane %v1999, 2
        %v2050 = vsel %vm1492, %v2048, %v2049
        %v2051 = vrot.slane %v2000, 2
        %v2052 = vsel %vm1492, %v2049, %v2051
        %v2053 = vrot.slane %v2001, 2
        %v2054 = vrot.slane %v2002, 2
        %v2055 = vsel %vm1492, %v2053, %v2054
        %v2056 = vrot.slane %v2003, 2
        %v2057 = vsel %vm1492, %v2054, %v2056
        %v2058 = vrot.slane %v2004, 2
        %v2059 = vrot.slane %v2005, 2
        %v2060 = vsel %vm1492, %v2058, %v2059
        %v2061 = vrot.slane %v2006, 2
        %v2062 = vsel %vm1492, %v2059, %v2061
        %v2063 = vrot.slane %v2007, 2
        %v2064 = vrot.slane %v2008, 2
        %v2065 = vsel %vm1492, %v2063, %v2064
        %v2066 = vrot.slane %v2009, 2
        %v2067 = vsel %vm1492, %v2064, %v2066
        %v2068 = vrot.slane %v2010, 2
        %v2069 = vrot.slane %v2011, 2
        %v2070 = vsel %vm1492, %v2068, %v2069
        %v2071 = vrot.slane %v2012, 2
        %v2072 = vsel %vm1492, %v2069, %v2071
        %v2073 = vrot.slane %v2013, 2
        %v2074 = vrot.slane %v2014, 2
        %v2075 = vsel %vm1492, %v2073, %v2074
        %v2076 = vrot.slane %v2015, 2
        %v2077 = vsel %vm1492, %v2074, %v2076
        %v2078 = vrot.slane %v2016, 2
        %v2079 = vrot.slane %v2017, 2
        %v2080 = vsel %vm1492, %v2078, %v2079
        %v2081 = vrot.slane %v2018, 2
        %v2082 = vsel %vm1492, %v2079, %v2081
        %v2099 = vadd.f32 %v1978, %v2045
        %v2100 = vadd.f32 %v1979, %v2047
        %v2101 = vadd.f32 %v1980, %v2050
        %v2102 = vadd.f32 %v1981, %v2052
        %v2103 = vadd.f32 %v1982, %v2055
        %v2104 = vadd.f32 %v1983, %v2057
        %v2105 = vadd.f32 %v1984, %v2060
        %v2106 = vadd.f32 %v1985, %v2062
        %v2107 = vadd.f32 %v1986, %v2065
        %v2108 = vadd.f32 %v1987, %v2067
        %v2109 = vadd.f32 %v1988, %v2070
        %v2110 = vadd.f32 %v1989, %v2072
        %v2111 = vadd.f32 %v1990, %v2075
        %v2112 = vadd.f32 %v1991, %v2077
        %v2113 = vadd.f32 %v1992, %v2080
        %v2114 = vadd.f32 %v1993, %v2082
        %v2115 = vld [vmem:[%s5] sm:$0x1]
        %v2117 = vperm.slane %v2115, 0
        %v2119 = vmul.f32 %v2099, %v2117
        %v2120 = vmul.f32 %v2100, %v2117
        %v2121 = vmul.f32 %v2101, %v2117
        %v2122 = vmul.f32 %v2102, %v2117
        %v2123 = vmul.f32 %v2103, %v2117
        %v2124 = vmul.f32 %v2104, %v2117
        %v2125 = vmul.f32 %v2105, %v2117
        %v2126 = vmul.f32 %v2106, %v2117
        %v2127 = vmul.f32 %v2107, %v2117
        %v2128 = vmul.f32 %v2108, %v2117
        %v2129 = vmul.f32 %v2109, %v2117
        %v2130 = vmul.f32 %v2110, %v2117
        %v2131 = vmul.f32 %v2111, %v2117
        %v2132 = vmul.f32 %v2112, %v2117
        %v2133 = vmul.f32 %v2113, %v2117
        %v2134 = vmul.f32 %v2114, %v2117
        %v2135 = vld [vmem:[%s6] sm:$0x1]
        %v2137 = vperm.slane %v2135, 0
        %v2139 = vadd.f32 %v2119, %v2137
        %v2140 = vadd.f32 %v2120, %v2137
        %v2141 = vadd.f32 %v2121, %v2137
        %v2142 = vadd.f32 %v2122, %v2137
        %v2143 = vadd.f32 %v2123, %v2137
        %v2144 = vadd.f32 %v2124, %v2137
        %v2145 = vadd.f32 %v2125, %v2137
        %v2146 = vadd.f32 %v2126, %v2137
        %v2147 = vadd.f32 %v2127, %v2137
        %v2148 = vadd.f32 %v2128, %v2137
        %v2149 = vadd.f32 %v2129, %v2137
        %v2150 = vadd.f32 %v2130, %v2137
        %v2151 = vadd.f32 %v2131, %v2137
        %v2152 = vadd.f32 %v2132, %v2137
        %v2153 = vadd.f32 %v2133, %v2137
        %v2154 = vadd.f32 %v2134, %v2137
        %v2155 = vmax.f32 %v2139, 0.0
        %v2156 = vmax.f32 %v2140, 0.0
        %v2157 = vmax.f32 %v2141, 0.0
        %v2158 = vmax.f32 %v2142, 0.0
        %v2159 = vmax.f32 %v2143, 0.0
        %v2160 = vmax.f32 %v2144, 0.0
        %v2161 = vmax.f32 %v2145, 0.0
        %v2162 = vmax.f32 %v2146, 0.0
        %v2163 = vmax.f32 %v2147, 0.0
        %v2164 = vmax.f32 %v2148, 0.0
        %v2165 = vmax.f32 %v2149, 0.0
        %v2166 = vmax.f32 %v2150, 0.0
        %v2167 = vmax.f32 %v2151, 0.0
        %v2168 = vmax.f32 %v2152, 0.0
        %v2169 = vmax.f32 %v2153, 0.0
        %v2170 = vmax.f32 %v2154, 0.0
        %v2171 = vld [vmem:[%s7] sm:$0xff]
        %v2172 = vld [vmem:[%s7 + $0x8] sm:$0xff]
        %v2173 = vld [vmem:[%s7 + $0x10] sm:$0xff]
        %v2174 = vld [vmem:[%s7 + $0x18] sm:$0xff]
        %v2175 = vld [vmem:[%s7 + $0x20] sm:$0xff]
        %v2176 = vld [vmem:[%s7 + $0x28] sm:$0xff]
        %v2177 = vld [vmem:[%s7 + $0x30] sm:$0xff]
        %v2178 = vld [vmem:[%s7 + $0x38] sm:$0xff]
        %v2179 = vld [vmem:[%s7 + $0x40] sm:$0xff]
        %v2180 = vld [vmem:[%s7 + $0x48] sm:$0xff]
        %v2181 = vld [vmem:[%s7 + $0x50] sm:$0xff]
        %v2182 = vld [vmem:[%s7 + $0x58] sm:$0xff]
        %v2183 = vld [vmem:[%s7 + $0x60] sm:$0xff]
        %v2184 = vld [vmem:[%s7 + $0x68] sm:$0xff]
        %v2185 = vld [vmem:[%s7 + $0x70] sm:$0xff]
        %v2186 = vld [vmem:[%s7 + $0x78] sm:$0xff]
        %2187 = vmatpush.msra.mxu0 %v2186
        %2188 = vmatpush.msra.mxu0 %v2185
        %2189 = vmatpush.msra.mxu0 %v2184
        %2190 = vmatpush.msra.mxu0 %v2183
        %2191 = vmatpush.msra.mxu0 %v2182
        %2192 = vmatpush.msra.mxu0 %v2181
        %2193 = vmatpush.msra.mxu0 %v2180
        %2194 = vmatpush.msra.mxu0 %v2179
        %2195 = vmatpush.msra.mxu0 %v2178
        %2196 = vmatpush.msra.mxu0 %v2177
        %2197 = vmatpush.msra.mxu0 %v2176
        %2198 = vmatpush.msra.mxu0 %v2175
        %2199 = vmatpush.msra.mxu0 %v2174
        %2200 = vmatpush.msra.mxu0 %v2173
        %2201 = vmatpush.msra.mxu0 %v2172
        %2202 = vmatpush.msra.mxu0 %v2171
        %2203 = vmatmul.f32.gmra.mxu0 %v2155
        %v2204 = vpop.f32.mrf.mxu0
        %v2205 = vadd.f32 0.0, %v2204
        %2206 = vmatmul.f32.gmra.mxu0 %v2156
        %v2207 = vpop.f32.mrf.mxu0
        %v2208 = vadd.f32 0.0, %v2207
        %2209 = vmatmul.f32.gmra.mxu0 %v2157
        %v2210 = vpop.f32.mrf.mxu0
        %v2211 = vadd.f32 0.0, %v2210
        %2212 = vmatmul.f32.gmra.mxu0 %v2158
        %v2213 = vpop.f32.mrf.mxu0
        %v2214 = vadd.f32 0.0, %v2213
        %2215 = vmatmul.f32.gmra.mxu0 %v2159
        %v2216 = vpop.f32.mrf.mxu0
        %v2217 = vadd.f32 0.0, %v2216
        %2218 = vmatmul.f32.gmra.mxu0 %v2160
        %v2219 = vpop.f32.mrf.mxu0
        %v2220 = vadd.f32 0.0, %v2219
        %2221 = vmatmul.f32.gmra.mxu0 %v2161
        %v2222 = vpop.f32.mrf.mxu0
        %v2223 = vadd.f32 0.0, %v2222
        %2224 = vmatmul.f32.gmra.mxu0 %v2162
        %v2225 = vpop.f32.mrf.mxu0
        %v2226 = vadd.f32 0.0, %v2225
        %2227 = vmatmul.f32.gmra.mxu0 %v2163
        %v2228 = vpop.f32.mrf.mxu0
        %v2229 = vadd.f32 0.0, %v2228
        %2230 = vmatmul.f32.gmra.mxu0 %v2164
        %v2231 = vpop.f32.mrf.mxu0
        %v2232 = vadd.f32 0.0, %v2231
        %2233 = vmatmul.f32.gmra.mxu0 %v2165
        %v2234 = vpop.f32.mrf.mxu0
        %v2235 = vadd.f32 0.0, %v2234
        %2236 = vmatmul.f32.gmra.mxu0 %v2166
        %v2237 = vpop.f32.mrf.mxu0
        %v2238 = vadd.f32 0.0, %v2237
        %2239 = vmatmul.f32.gmra.mxu0 %v2167
        %v2240 = vpop.f32.mrf.mxu0
        %v2241 = vadd.f32 0.0, %v2240
        %2242 = vmatmul.f32.gmra.mxu0 %v2168
        %v2243 = vpop.f32.mrf.mxu0
        %v2244 = vadd.f32 0.0, %v2243
        %2245 = vmatmul.f32.gmra.mxu0 %v2169
        %v2246 = vpop.f32.mrf.mxu0
        %v2247 = vadd.f32 0.0, %v2246
        %2248 = vmatmul.f32.gmra.mxu0 %v2170
        %v2249 = vpop.f32.mrf.mxu0
        %v2250 = vadd.f32 0.0, %v2249
        %2251 = vdwg.mxu0
        %v2252 = vld [vmem:[%s8] sm:$0x1]
        %v2254 = vperm.slane %v2252, 0
        %v2256 = vmul.f32 %v2205, %v2254
        %v2257 = vmul.f32 %v2208, %v2254
        %v2258 = vmul.f32 %v2211, %v2254
        %v2259 = vmul.f32 %v2214, %v2254
        %v2260 = vmul.f32 %v2217, %v2254
        %v2261 = vmul.f32 %v2220, %v2254
        %v2262 = vmul.f32 %v2223, %v2254
        %v2263 = vmul.f32 %v2226, %v2254
        %v2264 = vmul.f32 %v2229, %v2254
        %v2265 = vmul.f32 %v2232, %v2254
        %v2266 = vmul.f32 %v2235, %v2254
        %v2267 = vmul.f32 %v2238, %v2254
        %v2268 = vmul.f32 %v2241, %v2254
        %v2269 = vmul.f32 %v2244, %v2254
        %v2270 = vmul.f32 %v2247, %v2254
        %v2271 = vmul.f32 %v2250, %v2254
        %v2272 = vld [vmem:[%s9] sm:$0x1]
        %v2274 = vperm.slane %v2272, 0
        %v2276 = vadd.f32 %v2256, %v2274
        %v2277 = vadd.f32 %v2257, %v2274
        %v2278 = vadd.f32 %v2258, %v2274
        %v2279 = vadd.f32 %v2259, %v2274
        %v2280 = vadd.f32 %v2260, %v2274
        %v2281 = vadd.f32 %v2261, %v2274
        %v2282 = vadd.f32 %v2262, %v2274
        %v2283 = vadd.f32 %v2263, %v2274
        %v2284 = vadd.f32 %v2264, %v2274
        %v2285 = vadd.f32 %v2265, %v2274
        %v2286 = vadd.f32 %v2266, %v2274
        %v2287 = vadd.f32 %v2267, %v2274
        %v2288 = vadd.f32 %v2268, %v2274
        %v2289 = vadd.f32 %v2269, %v2274
        %v2290 = vadd.f32 %v2270, %v2274
        %v2291 = vadd.f32 %v2271, %v2274
        %v2292 = vrot.slane %v460, 1
        %v2293 = vrot.slane %v461, 1
        %v2294 = vsel %vm1370, %v2292, %v2293
        %v2295 = vrot.slane %v462, 1
        %v2296 = vsel %vm1370, %v2293, %v2295
        %v2297 = vrot.slane %v463, 1
        %v2298 = vrot.slane %v464, 1
        %v2299 = vsel %vm1370, %v2297, %v2298
        %v2300 = vrot.slane %v465, 1
        %v2301 = vsel %vm1370, %v2298, %v2300
        %v2302 = vrot.slane %v466, 1
        %v2303 = vrot.slane %v467, 1
        %v2304 = vsel %vm1370, %v2302, %v2303
        %v2305 = vrot.slane %v468, 1
        %v2306 = vsel %vm1370, %v2303, %v2305
        %v2307 = vrot.slane %v469, 1
        %v2308 = vrot.slane %v470, 1
        %v2309 = vsel %vm1370, %v2307, %v2308
        %v2310 = vrot.slane %v471, 1
        %v2311 = vsel %vm1370, %v2308, %v2310
        %v2312 = vrot.slane %v472, 1
        %v2313 = vrot.slane %v473, 1
        %v2314 = vsel %vm1370, %v2312, %v2313
        %v2315 = vrot.slane %v474, 1
        %v2316 = vsel %vm1370, %v2313, %v2315
        %v2317 = vrot.slane %v475, 1
        %v2318 = vrot.slane %v476, 1
        %v2319 = vsel %vm1370, %v2317, %v2318
        %v2320 = vrot.slane %v477, 1
        %v2321 = vsel %vm1370, %v2318, %v2320
        %v2322 = vrot.slane %v478, 1
        %v2323 = vrot.slane %v479, 1
        %v2324 = vsel %vm1370, %v2322, %v2323
        %v2325 = vrot.slane %v480, 1
        %v2326 = vsel %vm1370, %v2323, %v2325
        %v2327 = vrot.slane %v481, 1
        %v2328 = vrot.slane %v482, 1
        %v2329 = vsel %vm1370, %v2327, %v2328
        %v2330 = vrot.slane %v483, 1
        %v2331 = vsel %vm1370, %v2328, %v2330
        %v2348 = vld [vmem:[%s10] sm:$0xff]
        %v2349 = vld [vmem:[%s10 + $0x8] sm:$0xff]
        %v2350 = vld [vmem:[%s10 + $0x10] sm:$0xff]
        %v2351 = vld [vmem:[%s10 + $0x18] sm:$0xff]
        %v2352 = vld [vmem:[%s10 + $0x20] sm:$0xff]
        %v2353 = vld [vmem:[%s10 + $0x28] sm:$0xff]
        %v2354 = vld [vmem:[%s10 + $0x30] sm:$0xff]
        %v2355 = vld [vmem:[%s10 + $0x38] sm:$0xff]
        %v2356 = vld [vmem:[%s10 + $0x40] sm:$0xff]
        %v2357 = vld [vmem:[%s10 + $0x48] sm:$0xff]
        %v2358 = vld [vmem:[%s10 + $0x50] sm:$0xff]
        %v2359 = vld [vmem:[%s10 + $0x58] sm:$0xff]
        %v2360 = vld [vmem:[%s10 + $0x60] sm:$0xff]
        %v2361 = vld [vmem:[%s10 + $0x68] sm:$0xff]
        %v2362 = vld [vmem:[%s10 + $0x70] sm:$0xff]
        %v2363 = vld [vmem:[%s10 + $0x78] sm:$0xff]
        %2364 = vmatpush.msra.mxu0 %v2363
        %2365 = vmatpush.msra.mxu0 %v2362
        %2366 = vmatpush.msra.mxu0 %v2361
        %2367 = vmatpush.msra.mxu0 %v2360
        %2368 = vmatpush.msra.mxu0 %v2359
        %2369 = vmatpush.msra.mxu0 %v2358
        %2370 = vmatpush.msra.mxu0 %v2357
        %2371 = vmatpush.msra.mxu0 %v2356
        %2372 = vmatpush.msra.mxu0 %v2355
        %2373 = vmatpush.msra.mxu0 %v2354
        %2374 = vmatpush.msra.mxu0 %v2353
        %2375 = vmatpush.msra.mxu0 %v2352
        %2376 = vmatpush.msra.mxu0 %v2351
        %2377 = vmatpush.msra.mxu0 %v2350
        %2378 = vmatpush.msra.mxu0 %v2349
        %2379 = vmatpush.msra.mxu0 %v2348
        %2380 = vmatmul.f32.gmra.mxu0 %v2294
        %v2381 = vpop.f32.mrf.mxu0
        %v2382 = vadd.f32 0.0, %v2381
        %2383 = vmatmul.f32.gmra.mxu0 %v2296
        %v2384 = vpop.f32.mrf.mxu0
        %v2385 = vadd.f32 0.0, %v2384
        %2386 = vmatmul.f32.gmra.mxu0 %v2299
        %v2387 = vpop.f32.mrf.mxu0
        %v2388 = vadd.f32 0.0, %v2387
        %2389 = vmatmul.f32.gmra.mxu0 %v2301
        %v2390 = vpop.f32.mrf.mxu0
        %v2391 = vadd.f32 0.0, %v2390
        %2392 = vmatmul.f32.gmra.mxu0 %v2304
        %v2393 = vpop.f32.mrf.mxu0
        %v2394 = vadd.f32 0.0, %v2393
        %2395 = vmatmul.f32.gmra.mxu0 %v2306
        %v2396 = vpop.f32.mrf.mxu0
        %v2397 = vadd.f32 0.0, %v2396
        %2398 = vmatmul.f32.gmra.mxu0 %v2309
        %v2399 = vpop.f32.mrf.mxu0
        %v2400 = vadd.f32 0.0, %v2399
        %2401 = vmatmul.f32.gmra.mxu0 %v2311
        %v2402 = vpop.f32.mrf.mxu0
        %v2403 = vadd.f32 0.0, %v2402
        %2404 = vmatmul.f32.gmra.mxu0 %v2314
        %v2405 = vpop.f32.mrf.mxu0
        %v2406 = vadd.f32 0.0, %v2405
        %2407 = vmatmul.f32.gmra.mxu0 %v2316
        %v2408 = vpop.f32.mrf.mxu0
        %v2409 = vadd.f32 0.0, %v2408
        %2410 = vmatmul.f32.gmra.mxu0 %v2319
        %v2411 = vpop.f32.mrf.mxu0
        %v2412 = vadd.f32 0.0, %v2411
        %2413 = vmatmul.f32.gmra.mxu0 %v2321
        %v2414 = vpop.f32.mrf.mxu0
        %v2415 = vadd.f32 0.0, %v2414
        %2416 = vmatmul.f32.gmra.mxu0 %v2324
        %v2417 = vpop.f32.mrf.mxu0
        %v2418 = vadd.f32 0.0, %v2417
        %2419 = vmatmul.f32.gmra.mxu0 %v2326
        %v2420 = vpop.f32.mrf.mxu0
        %v2421 = vadd.f32 0.0, %v2420
        %2422 = vmatmul.f32.gmra.mxu0 %v2329
        %v2423 = vpop.f32.mrf.mxu0
        %v2424 = vadd.f32 0.0, %v2423
        %2425 = vmatmul.f32.gmra.mxu0 %v2331
        %v2426 = vpop.f32.mrf.mxu0
        %v2427 = vadd.f32 0.0, %v2426
        %2428 = vdwg.mxu0
        %v2429 = vld [vmem:[%s11] sm:$0x1]
        %v2431 = vperm.slane %v2429, 0
        %v2433 = vmul.f32 %v2382, %v2431
        %v2434 = vmul.f32 %v2385, %v2431
        %v2435 = vmul.f32 %v2388, %v2431
        %v2436 = vmul.f32 %v2391, %v2431
        %v2437 = vmul.f32 %v2394, %v2431
        %v2438 = vmul.f32 %v2397, %v2431
        %v2439 = vmul.f32 %v2400, %v2431
        %v2440 = vmul.f32 %v2403, %v2431
        %v2441 = vmul.f32 %v2406, %v2431
        %v2442 = vmul.f32 %v2409, %v2431
        %v2443 = vmul.f32 %v2412, %v2431
        %v2444 = vmul.f32 %v2415, %v2431
        %v2445 = vmul.f32 %v2418, %v2431
        %v2446 = vmul.f32 %v2421, %v2431
        %v2447 = vmul.f32 %v2424, %v2431
        %v2448 = vmul.f32 %v2427, %v2431
        %v2449 = vld [vmem:[%s12] sm:$0x1]
        %v2451 = vperm.slane %v2449, 0
        %v2453 = vadd.f32 %v2433, %v2451
        %v2454 = vadd.f32 %v2434, %v2451
        %v2455 = vadd.f32 %v2435, %v2451
        %v2456 = vadd.f32 %v2436, %v2451
        %v2457 = vadd.f32 %v2437, %v2451
        %v2458 = vadd.f32 %v2438, %v2451
        %v2459 = vadd.f32 %v2439, %v2451
        %v2460 = vadd.f32 %v2440, %v2451
        %v2461 = vadd.f32 %v2441, %v2451
        %v2462 = vadd.f32 %v2442, %v2451
        %v2463 = vadd.f32 %v2443, %v2451
        %v2464 = vadd.f32 %v2444, %v2451
        %v2465 = vadd.f32 %v2445, %v2451
        %v2466 = vadd.f32 %v2446, %v2451
        %v2467 = vadd.f32 %v2447, %v2451
        %v2468 = vadd.f32 %v2448, %v2451
        %v2469 = vadd.f32 %v2276, %v2453
        %v2470 = vadd.f32 %v2277, %v2454
        %v2471 = vadd.f32 %v2278, %v2455
        %v2472 = vadd.f32 %v2279, %v2456
        %v2473 = vadd.f32 %v2280, %v2457
        %v2474 = vadd.f32 %v2281, %v2458
        %v2475 = vadd.f32 %v2282, %v2459
        %v2476 = vadd.f32 %v2283, %v2460
        %v2477 = vadd.f32 %v2284, %v2461
        %v2478 = vadd.f32 %v2285, %v2462
        %v2479 = vadd.f32 %v2286, %v2463
        %v2480 = vadd.f32 %v2287, %v2464
        %v2481 = vadd.f32 %v2288, %v2465
        %v2482 = vadd.f32 %v2289, %v2466
        %v2483 = vadd.f32 %v2290, %v2467
        %v2484 = vadd.f32 %v2291, %v2468
        %2485 = vst [vmem:[%s447] sm:$0xff] %v2469
        %2486 = vst [vmem:[%s447 + $0x8] sm:$0xff] %v2470
        %2487 = vst [vmem:[%s447 + $0x10] sm:$0xff] %v2471
        %2488 = vst [vmem:[%s447 + $0x18] sm:$0xff] %v2472
        %2489 = vst [vmem:[%s447 + $0x20] sm:$0xff] %v2473
        %2490 = vst [vmem:[%s447 + $0x28] sm:$0xff] %v2474
        %2491 = vst [vmem:[%s447 + $0x30] sm:$0xff] %v2475
        %2492 = vst [vmem:[%s447 + $0x38] sm:$0xff] %v2476
        %2493 = vst [vmem:[%s447 + $0x40] sm:$0xff] %v2477
        %2494 = vst [vmem:[%s447 + $0x48] sm:$0xff] %v2478
        %2495 = vst [vmem:[%s447 + $0x50] sm:$0xff] %v2479
        %2496 = vst [vmem:[%s447 + $0x58] sm:$0xff] %v2480
        %2497 = vst [vmem:[%s447 + $0x60] sm:$0xff] %v2481
        %2498 = vst [vmem:[%s447 + $0x68] sm:$0xff] %v2482
        %2499 = vst [vmem:[%s447 + $0x70] sm:$0xff] %v2483
        %2500 = vst [vmem:[%s447 + $0x78] sm:$0xff] %v2484
        %s2501 = sand.u32 %s327, 1
        %s2502 = scalar_lea.sflag [#allocation3], %s2501
        %s2503 = sand.u32 %s327, 1
        %s2504 = smul.addr %s2503, 128
        %s2505 = scalar_lea.vmem [#allocation2], %s2504
        // Predicated region
        $region73: #{tpu_custom_call.1} parent=71 // pred_check
          %p2506 = pneg %p337
        $region74: #{tpu_custom_call.1} parent=71 // pred_check_branch
          %2508 = sbr.rel (%p2506) target = $region76
        $region75: #{tpu_custom_call.1} parent=71 // pred_region
          %s2509 = smul.u32 8, %s32
          %2511 = vsyncadd %s2502, 0
          %s2512 = smul.addr %s2509, 2
          %s2513 = smul.addr %s31, 32
          %s2514 = sadd.s32 %s2512, %s2513
          %s2515 = smul.addr %s2514, 8
          %s2516 = scalar_lea.hbm %s13, %s2515
          %s2517 = sshll.u32 %s2505, 4
          %s2518 = int_to_ptr.vmem [resolvable:$true] %s2517
          %s2519 = sshll.u32 %s2516, 4
          %s2520 = int_to_ptr.hbm [resolvable:$true] %s2519
          %2525 = dma.vmem_to_hbm [thread:$0]  %s2518, 2048, %s2520, %s2502, 128, 128, 8
        $region76: #{tpu_custom_call.1} parent=71 // pred_fallthru
          _
      $region72: #{tpu_custom_call.1} parent=5 // pred_fallthru
        _
      %p2526 = scmp.le.s32.totalorder 2, %s22
      // Predicated region
      $region77: #{tpu_custom_call.1} parent=5 // pred_check
        %p2527 = pneg %p2526
      $region78: #{tpu_custom_call.1} parent=5 // pred_check_branch
        %2529 = sbr.rel (%p2527) target = $region80
      $region79: #{tpu_custom_call.1} parent=5 // pred_region
        %s2530 = ssub.s32 %s22, 2
        // Predicated region
        $region81: #{tpu_custom_call.1} parent=79 // pred_check
          %p2531 = pneg %p343
        $region82: #{tpu_custom_call.1} parent=79 // pred_check_branch
          %2533 = sbr.rel (%p2531) target = $region84
        $region83: #{tpu_custom_call.1} parent=79 // pred_region
          %s2534 = sand.u32 %s328, 1
          %s2535 = scalar_lea.sflag [#allocation3], %s2534
          %s2536 = sand.u32 %s328, 1
          %s2537 = smul.addr %s2536, 128
          %s2538 = scalar_lea.vmem [#allocation2], %s2537
          %2540 = dma.done %s2535, 2048
        $region84: #{tpu_custom_call.1} parent=79 // pred_fallthru
          _
      $region80: #{tpu_custom_call.1} parent=5 // pred_fallthru
        _
    $region6: #{tpu_custom_call.1} parent=1 // loop_footer
      %s26 = sadd.s32 1, %s22
    $region7: #{tpu_custom_call.1} parent=1 // loop_footer_branch
      %21 = sbr.rel target = $region3
    $region8: #{tpu_custom_call.1} parent=1 // loop_exit
      _
    %2541 = vsyncpa [#allocation3], 1
    %s2542 = scalar_lea.sflag [#allocation3], 1
    %2543 = vsyncpa %s2542, 1

</llo_original>
